<compile_context>
chip_gen: v6e
topology: v6e:2x2x1
jax: 0.10.0
libtpu: 0.0.40
codegen_flags: <defaults>
</compile_context>

<pallas_src>
import functools

import jax
import jax.numpy as jnp
from jax.experimental import pallas as pl
from jax.experimental.pallas import tpu as pltpu


def _round_up(x: int, m: int) -> int:
    return (x + m - 1) // m * m


def _discriminator_kernel(x_ref, w1_ref, b1_ref, w2_ref, b2_ref, o_ref):
    # x_ref:  (tb, D)   f32  (per-step DMA; cast to bf16 in-register right before the MXU)
    # w1_ref: (D, Hp)   bf16 (grid-invariant, resident across batch tiles)
    # b1_ref: (1, Hp)   f32
    # w2_ref: (1, Hp)   f32
    # b2_ref: (1, 1)    f32
    # o_ref:  (tb, 1)   f32
    x_bf16 = x_ref[...].astype(jnp.bfloat16)
    # Layer 1: bf16 operands on the MXU, f32 accumulation.
    h = jnp.dot(x_bf16, w1_ref[...], preferred_element_type=jnp.float32)
    h = h + b1_ref[...]
    # LeakyReLU(0.2) in f32 on the VPU.
    h = jnp.where(h > 0, h, 0.2 * h)
    # Layer 2 (hidden -> 1): VPU multiply + XLU lane reduction instead of an N=1 MXU matmul.
    logit = jnp.sum(h * w2_ref[...], axis=-1, keepdims=True) + b2_ref[...]
    # Exact sigmoid (exp on EUP, exact reciprocal): output feeds a loss, so no approx recip here.
    o_ref[...] = (1.0 / (1.0 + jnp.exp(-logit))).astype(o_ref.dtype)


def _choose_block_b(B: int, image_dim: int, hidden_pad: int) -> int:
    """Pick a batch tile: big enough to amortize per-step overhead, >=4 tiles for v7x megacore
    sharding when B is large, capped so the x double-buffer + W1 stay far under scoped VMEM."""
    bp128 = _round_up(B, 128)
    if bp128 <= 256:
        return bp128  # tiny batch: one tile, grid=(1,)
    cand = min(1024, max(128, _round_up(bp128 // 4, 128)))

    def vmem_bytes(bb):
        x_bufs = 2 * bb * image_dim * 4           # f32 x tile, double-buffered
        w_bufs = 2 * image_dim * hidden_pad * 2   # bf16 W1 (conservatively x2)
        o_bufs = 2 * bb * 128 * 4                 # output tile, lane-padded
        return x_bufs + w_bufs + o_bufs

    while cand > 128 and vmem_bytes(cand) > (24 << 20):
        cand -= 128
    return cand


def prepare_discriminator_params(w1, b1, w2, b2):
    """One-time weight prep (hoisted out of the hot path): pad hidden dim to a lane multiple and
    cast W1 to bf16.  Padded hidden columns are zero everywhere, so they never affect the logit."""
    image_dim, hidden_dim = w1.shape
    hp = _round_up(hidden_dim, 128)
    w1p = jnp.zeros((image_dim, hp), jnp.bfloat16).at[:, :hidden_dim].set(w1.astype(jnp.bfloat16))
    b1p = jnp.zeros((1, hp), jnp.float32).at[:, :hidden_dim].set(
        b1.reshape(1, hidden_dim).astype(jnp.float32))
    w2p = jnp.zeros((1, hp), jnp.float32).at[:, :hidden_dim].set(
        w2.reshape(1, hidden_dim).astype(jnp.float32))
    b2p = b2.reshape(1, 1).astype(jnp.float32)
    return w1p, b1p, w2p, b2p


@functools.partial(jax.jit, static_argnames=("block_b",))
def _forward_impl(x, w1p, b1p, w2p, b2p, *, block_b):
    B, image_dim = x.shape
    hp = w1p.shape[1]
    Bp = _round_up(B, block_b)
    if Bp != B:
        # Batch-only zero pad (cheap); padded rows are computed and then discarded by the [:B] slice.
        x = jnp.pad(x, ((0, Bp - B), (0, 0)))

    grid = (Bp // block_b,)
    flops = 2 * Bp * image_dim * hp + 4 * Bp * hp
    bytes_accessed = (Bp * image_dim * 4 + w1p.size * 2 + b1p.size * 4
                      + w2p.size * 4 + b2p.size * 4 + Bp * 4)

    # NOTE: W1/b1/w2/b2 are grid-invariant; they could be marked pipeline_mode=pl.Buffered(1) to
    # save their second buffer, but total VMEM here is tiny so we keep the default for robustness.
    out = pl.pallas_call(
        _discriminator_kernel,
        out_shape=jax.ShapeDtypeStruct((Bp, 1), jnp.float32),
        grid_spec=pltpu.PrefetchScalarGridSpec(
            num_scalar_prefetch=0,
            grid=grid,
            in_specs=[
                pl.BlockSpec((block_b, image_dim), lambda i: (i, 0)),  # x tile (only per-step DMA)
                pl.BlockSpec((image_dim, hp), lambda i: (0, 0)),       # W1 (whole, grid-invariant)
                pl.BlockSpec((1, hp), lambda i: (0, 0)),               # b1
                pl.BlockSpec((1, hp), lambda i: (0, 0)),               # w2 as a row vector
                pl.BlockSpec((1, 1), lambda i: (0, 0)),                # b2
            ],
            out_specs=pl.BlockSpec((block_b, 1), lambda i: (i, 0)),
        ),
        compiler_params=pltpu.CompilerParams(
            # Batch tiles are independent -> shard across TensorCores on v7x; no-op on v5e/v6e.
            dimension_semantics=("parallel",),
        ),
        cost_estimate=pl.CostEstimate(
            flops=flops, transcendentals=Bp, bytes_accessed=bytes_accessed),
    )(x, w1p, b1p, w2p, b2p)

    return out[:B]


def discriminator_forward(x, prepared_params, *, block_b=None):
    """x: (B, image_dim) f32; prepared_params from prepare_discriminator_params().
    Returns (B, 1) sigmoid probabilities."""
    w1p, b1p, w2p, b2p = prepared_params
    B, image_dim = x.shape
    if block_b is None:
        block_b = _choose_block_b(B, image_dim, w1p.shape[1])
    return _forward_impl(x, w1p, b1p, w2p, b2p, block_b=block_b)


def init_discriminator_params(key, image_dim, hidden_dim):
    # PyTorch nn.Linear default init: U(-1/sqrt(fan_in), 1/sqrt(fan_in)).
    k1, k2, k3, k4 = jax.random.split(key, 4)
    bound1 = 1.0 / jnp.sqrt(image_dim)
    bound2 = 1.0 / jnp.sqrt(hidden_dim)
    w1 = jax.random.uniform(k1, (image_dim, hidden_dim), jnp.float32, -bound1, bound1)
    b1 = jax.random.uniform(k2, (hidden_dim,), jnp.float32, -bound1, bound1)
    w2 = jax.random.uniform(k3, (1, hidden_dim), jnp.float32, -bound2, bound2)
    b2 = jax.random.uniform(k4, (1,), jnp.float32, -bound2, bound2)
    return w1, b1, w2, b2


if __name__ == "__main__":
    # Shapes consistent with the module: image_dim=784 (flattened 28x28), hidden_dim=256.
    B, image_dim, hidden_dim = 96, 784, 256

    key = jax.random.PRNGKey(0)
    kx, kp = jax.random.split(key)
    x = jax.random.normal(kx, (B, image_dim), jnp.float32)
    w1, b1, w2, b2 = init_discriminator_params(kp, image_dim, hidden_dim)

    # Weight prep is done once (outside the hot path) and reused for every forward call.
    params = prepare_discriminator_params(w1, b1, w2, b2)

    out = discriminator_forward(x, params)
    out = jax.block_until_ready(out)

    # Reference in plain JAX, using the same bf16-rounded matmul operands as the kernel.
    # NOTE: the kernel uses bf16 MXU inputs (f32 accumulate), which deviates slightly from the
    # f32 numerics of a PyTorch nn.Linear; the tolerance below reflects that choice.
    xr = x.astype(jnp.bfloat16).astype(jnp.float32)
    w1r = w1.astype(jnp.bfloat16).astype(jnp.float32)
    h_ref = xr @ w1r + b1[None, :]
    h_ref = jnp.where(h_ref > 0, h_ref, 0.2 * h_ref)
    ref = jax.nn.sigmoid(h_ref @ w2.T + b2[None, :])

    assert out.shape == (B, 1)
    max_err = float(jnp.max(jnp.abs(out - ref)))
    assert max_err < 1e-2, f"max abs err {max_err}"

    print("KERNEL_OK")
</pallas_src>

<mosaic_0001>
module attributes {stable_mosaic.version = 11 : i64} {
  func.func @_discriminator_kernel(%arg0: i32, %arg1: memref<128x784xf32, #tpu.memory_space<vmem>>, %arg2: memref<784x256xbf16, #tpu.memory_space<vmem>>, %arg3: memref<1x256xf32, #tpu.memory_space<vmem>>, %arg4: memref<1x256xf32, #tpu.memory_space<vmem>>, %arg5: memref<1x1xf32, #tpu.memory_space<vmem>>, %arg6: memref<128x1xf32, #tpu.memory_space<vmem>>) attributes {dimension_semantics = [#tpu.dimension_semantics<parallel>], iteration_bounds = array<i64: 1>, scalar_prefetch = 0 : i64, scratch_operands = 0 : i64, tpu.core_type = #tpu.core_type<tc>, window_params = [{transform_indices = @transform_0, window_bounds = array<i64: 128, 784>}, {pipeline_mode = #tpu.pipeline_mode<synchronous>, transform_indices = @transform_1, window_bounds = array<i64: 784, 256>}, {pipeline_mode = #tpu.pipeline_mode<synchronous>, transform_indices = @transform_2, window_bounds = array<i64: 1, 256>}, {pipeline_mode = #tpu.pipeline_mode<synchronous>, transform_indices = @transform_3, window_bounds = array<i64: 1, 256>}, {pipeline_mode = #tpu.pipeline_mode<synchronous>, transform_indices = @transform_4, window_bounds = array<i64: 1, 1>}, {transform_indices = @transform_5, window_bounds = array<i64: 128, 1>}]} {
    %c0 = arith.constant 0 : index
    %c0_0 = arith.constant 0 : index
    %0 = vector.load %arg1[%c0, %c0_0] : memref<128x784xf32, #tpu.memory_space<vmem>>, vector<128x784xf32>
    %1 = arith.truncf %0 : vector<128x784xf32> to vector<128x784xbf16>
    %c0_1 = arith.constant 0 : index
    %c0_2 = arith.constant 0 : index
    %2 = vector.load %arg2[%c0_1, %c0_2] : memref<784x256xbf16, #tpu.memory_space<vmem>>, vector<784x256xbf16>
    %cst = arith.constant dense<0.000000e+00> : vector<128x256xf32>
    %3 = tpu.matmul %1, %2, %cst {dimension_numbers = #tpu.dot_dimension_numbers<[1], [0], [0], [1], [0, 0, 1, 1], [], []>} : vector<128x784xbf16>, vector<784x256xbf16>, vector<128x256xf32> -> vector<128x256xf32>
    %c0_3 = arith.constant 0 : index
    %c0_4 = arith.constant 0 : index
    %4 = vector.load %arg3[%c0_3, %c0_4] : memref<1x256xf32, #tpu.memory_space<vmem>>, vector<1x256xf32>
    %5 = vector.broadcast %4 : vector<1x256xf32> to vector<128x256xf32>
    %6 = arith.addf %3, %5 : vector<128x256xf32>
    %cst_5 = arith.constant 0.000000e+00 : f32
    %7 = vector.broadcast %cst_5 : f32 to vector<128x256xf32>
    %8 = arith.cmpf ogt, %6, %7 : vector<128x256xf32>
    %cst_6 = arith.constant 2.000000e-01 : f32
    %9 = vector.broadcast %cst_6 : f32 to vector<128x256xf32>
    %10 = arith.mulf %9, %6 : vector<128x256xf32>
    %11 = arith.select %8, %6, %10 : vector<128x256xi1>, vector<128x256xf32>
    %c0_7 = arith.constant 0 : index
    %c0_8 = arith.constant 0 : index
    %12 = vector.load %arg4[%c0_7, %c0_8] : memref<1x256xf32, #tpu.memory_space<vmem>>, vector<1x256xf32>
    %13 = vector.broadcast %12 : vector<1x256xf32> to vector<128x256xf32>
    %14 = arith.mulf %11, %13 : vector<128x256xf32>
    %cst_9 = arith.constant dense<0.000000e+00> : vector<128xf32>
    %15 = vector.multi_reduction <add>, %14, %cst_9 [1] : vector<128x256xf32> to vector<128xf32>
    %16 = vector.shape_cast %15 : vector<128xf32> to vector<128x1xf32>
    %c0_10 = arith.constant 0 : index
    %c0_11 = arith.constant 0 : index
    %17 = vector.load %arg5[%c0_10, %c0_11] : memref<1x1xf32, #tpu.memory_space<vmem>>, vector<1x1xf32>
    %18 = vector.broadcast %17 : vector<1x1xf32> to vector<128x1xf32>
    %19 = arith.addf %16, %18 : vector<128x1xf32>
    %cst_12 = arith.constant 0.000000e+00 : f32
    %20 = vector.broadcast %cst_12 : f32 to vector<128x1xf32>
    %21 = arith.subf %20, %19 : vector<128x1xf32>
    %22 = math.exp %21 : vector<128x1xf32>
    %cst_13 = arith.constant 1.000000e+00 : f32
    %23 = vector.broadcast %cst_13 : f32 to vector<128x1xf32>
    %24 = arith.addf %23, %22 : vector<128x1xf32>
    %cst_14 = arith.constant 1.000000e+00 : f32
    %25 = vector.broadcast %cst_14 : f32 to vector<128x1xf32>
    %26 = arith.divf %25, %24 : vector<128x1xf32>
    %c0_15 = arith.constant 0 : index
    %c0_16 = arith.constant 0 : index
    %27 = vector.load %arg6[%c0_15, %c0_16] : memref<128x1xf32, #tpu.memory_space<vmem>>, vector<128x1xf32>
    tpu.vector_store %arg6[%c0_15, %c0_16], %26 {strides = array<i32>} : memref<128x1xf32, #tpu.memory_space<vmem>>, vector<128x1xf32>,
    return
  }
  func.func @transform_0(%arg0: i32) -> (i32, i32) {
    %c0_i32 = arith.constant 0 : i32
    %c0_i32_0 = arith.constant 0 : i32
    return %arg0, %c0_i32 : i32, i32
  }
  func.func @transform_1(%arg0: i32) -> (i32, i32) {
    %c0_i32 = arith.constant 0 : i32
    %c0_i32_0 = arith.constant 0 : i32
    %c0_i32_1 = arith.constant 0 : i32
    return %c0_i32, %c0_i32_0 : i32, i32
  }
  func.func @transform_2(%arg0: i32) -> (i32, i32) {
    %c0_i32 = arith.constant 0 : i32
    %c0_i32_0 = arith.constant 0 : i32
    %c0_i32_1 = arith.constant 0 : i32
    return %c0_i32, %c0_i32_0 : i32, i32
  }
  func.func @transform_3(%arg0: i32) -> (i32, i32) {
    %c0_i32 = arith.constant 0 : i32
    %c0_i32_0 = arith.constant 0 : i32
    %c0_i32_1 = arith.constant 0 : i32
    return %c0_i32, %c0_i32_0 : i32, i32
  }
  func.func @transform_4(%arg0: i32) -> (i32, i32) {
    %c0_i32 = arith.constant 0 : i32
    %c0_i32_0 = arith.constant 0 : i32
    %c0_i32_1 = arith.constant 0 : i32
    return %c0_i32, %c0_i32_0 : i32, i32
  }
  func.func @transform_5(%arg0: i32) -> (i32, i32) {
    %c0_i32 = arith.constant 0 : i32
    %c0_i32_0 = arith.constant 0 : i32
    return %arg0, %c0_i32 : i32, i32
  }
}

</mosaic_0001>

<llo_original>
// kernel: _forward_impl.1
$region0: #{_forward_impl.1}
  #allocation0 [shape = 'u32[]', space=smem, size = 0x4, offset = 0x4, fixed_abs, tag = 'smem constant byte address 0x4 - core index']
  #allocation1 [shape = 'u32[144,128]{1,0:T(1,128)}', space=vmem, size = 0x12000, scoped, tag = 'internal scratch']
  #allocation2 [shape = 'f32[1,1]{1,0:T(1,128)S(1)}', space=vmem, size = 0x200, scoped, tag = 'scoped memory for _forward_impl.1']
  %s0 = inlined_call_operand.vmem [shape: f32[128,784], index: 0, kind: input, shape index: {}]
  %s1 = inlined_call_operand.vmem [shape: bf16[784,256], index: 1, kind: input, shape index: {}]
  %s2 = inlined_call_operand.vmem [shape: f32[1,256], index: 2, kind: input, shape index: {}]
  %s3 = inlined_call_operand.vmem [shape: f32[1,256], index: 3, kind: input, shape index: {}]
  %s4 = inlined_call_operand.<no memory space> [shape: f32[1,1], index: 4, kind: input, shape index: {}]
  %s5 = inlined_call_operand.vmem [shape: f32[128,1], index: 5, kind: output, shape index: {}]
  %s6 = sld [smem:[#allocation0]]
  $region30: #{_forward_impl.1} parent=0
    _
  %s8 = ssub.s32 1, %s6
  %s9 = scalar_select 0, %s8, %s6
  %v10 = vstv %s4
  %11 = vst [vmem:[#allocation2] sm:$0x1] %v10
  // Predicated region
  $region2: #{_forward_impl.1} parent=0 // pred_check
    _
  $region3: #{_forward_impl.1} parent=0 // pred_check_branch
    %13 = sbr.rel (0) target = $region5
  $region4: #{_forward_impl.1} parent=0 // pred_region
    _
  $region5: #{_forward_impl.1} parent=0 // pred_fallthru
    _
  // Predicated region
  $region6: #{_forward_impl.1} parent=0 // pred_check
    _
  $region7: #{_forward_impl.1} parent=0 // pred_check_branch
    %15 = sbr.rel (0) target = $region9
  $region8: #{_forward_impl.1} parent=0 // pred_region
    _
  $region9: #{_forward_impl.1} parent=0 // pred_fallthru
    _
  // Predicated region
  $region10: #{_forward_impl.1} parent=0 // pred_check
    _
  $region11: #{_forward_impl.1} parent=0 // pred_check_branch
    %17 = sbr.rel (0) target = $region13
  $region12: #{_forward_impl.1} parent=0 // pred_region
    _
  $region13: #{_forward_impl.1} parent=0 // pred_fallthru
    _
  // Predicated region
  $region14: #{_forward_impl.1} parent=0 // pred_check
    _
  $region15: #{_forward_impl.1} parent=0 // pred_check_branch
    %19 = sbr.rel (0) target = $region17
  $region16: #{_forward_impl.1} parent=0 // pred_region
    _
  $region17: #{_forward_impl.1} parent=0 // pred_fallthru
    _
  // Predicated region
  $region18: #{_forward_impl.1} parent=0 // pred_check
    _
  $region19: #{_forward_impl.1} parent=0 // pred_check_branch
    %21 = sbr.rel (0) target = $region21
  $region20: #{_forward_impl.1} parent=0 // pred_region
    _
  $region21: #{_forward_impl.1} parent=0 // pred_fallthru
    _
  %v23 = vld [vmem:[%s0] sm:$0xff]
  %v24 = vld [vmem:[%s0 + $0x8] sm:$0xff]
  %v25 = vld [vmem:[%s0 + $0x10] sm:$0xff]
  %v26 = vld [vmem:[%s0 + $0x18] sm:$0xff]
  %v27 = vld [vmem:[%s0 + $0x20] sm:$0xff]
  %v28 = vld [vmem:[%s0 + $0x28] sm:$0xff]
  %v29 = vld [vmem:[%s0 + $0x30] sm:$0xff]
  %v30 = vld [vmem:[%s0 + $0x38] sm:$0xff]
  %v31 = vld [vmem:[%s0 + $0x40] sm:$0xff]
  %v32 = vld [vmem:[%s0 + $0x48] sm:$0xff]
  %v33 = vld [vmem:[%s0 + $0x50] sm:$0xff]
  %v34 = vld [vmem:[%s0 + $0x58] sm:$0xff]
  %v35 = vld [vmem:[%s0 + $0x60] sm:$0xff]
  %v36 = vld [vmem:[%s0 + $0x68] sm:$0xff]
  %v37 = vld [vmem:[%s0 + $0x70] sm:$0xff]
  %v38 = vld [vmem:[%s0 + $0x78] sm:$0xff]
  %v39 = vld [vmem:[%s0 + $0x80] sm:$0xff]
  %v40 = vld [vmem:[%s0 + $0x88] sm:$0xff]
  %v41 = vld [vmem:[%s0 + $0x90] sm:$0xff]
  %v42 = vld [vmem:[%s0 + $0x98] sm:$0xff]
  %v43 = vld [vmem:[%s0 + $0xa0] sm:$0xff]
  %v44 = vld [vmem:[%s0 + $0xa8] sm:$0xff]
  %v45 = vld [vmem:[%s0 + $0xb0] sm:$0xff]
  %v46 = vld [vmem:[%s0 + $0xb8] sm:$0xff]
  %v47 = vld [vmem:[%s0 + $0xc0] sm:$0xff]
  %v48 = vld [vmem:[%s0 + $0xc8] sm:$0xff]
  %v49 = vld [vmem:[%s0 + $0xd0] sm:$0xff]
  %v50 = vld [vmem:[%s0 + $0xd8] sm:$0xff]
  %v51 = vld [vmem:[%s0 + $0xe0] sm:$0xff]
  %v52 = vld [vmem:[%s0 + $0xe8] sm:$0xff]
  %v53 = vld [vmem:[%s0 + $0xf0] sm:$0xff]
  %v54 = vld [vmem:[%s0 + $0xf8] sm:$0xff]
  %v55 = vld [vmem:[%s0 + $0x100] sm:$0xff]
  %v56 = vld [vmem:[%s0 + $0x108] sm:$0xff]
  %v57 = vld [vmem:[%s0 + $0x110] sm:$0xff]
  %v58 = vld [vmem:[%s0 + $0x118] sm:$0xff]
  %v59 = vld [vmem:[%s0 + $0x120] sm:$0xff]
  %v60 = vld [vmem:[%s0 + $0x128] sm:$0xff]
  %v61 = vld [vmem:[%s0 + $0x130] sm:$0xff]
  %v62 = vld [vmem:[%s0 + $0x138] sm:$0xff]
  %v63 = vld [vmem:[%s0 + $0x140] sm:$0xff]
  %v64 = vld [vmem:[%s0 + $0x148] sm:$0xff]
  %v65 = vld [vmem:[%s0 + $0x150] sm:$0xff]
  %v66 = vld [vmem:[%s0 + $0x158] sm:$0xff]
  %v67 = vld [vmem:[%s0 + $0x160] sm:$0xff]
  %v68 = vld [vmem:[%s0 + $0x168] sm:$0xff]
  %v69 = vld [vmem:[%s0 + $0x170] sm:$0xff]
  %v70 = vld [vmem:[%s0 + $0x178] sm:$0xff]
  %v71 = vld [vmem:[%s0 + $0x180] sm:$0xff]
  %v72 = vld [vmem:[%s0 + $0x188] sm:$0xff]
  %v73 = vld [vmem:[%s0 + $0x190] sm:$0xff]
  %v74 = vld [vmem:[%s0 + $0x198] sm:$0xff]
  %v75 = vld [vmem:[%s0 + $0x1a0] sm:$0xff]
  %v76 = vld [vmem:[%s0 + $0x1a8] sm:$0xff]
  %v77 = vld [vmem:[%s0 + $0x1b0] sm:$0xff]
  %v78 = vld [vmem:[%s0 + $0x1b8] sm:$0xff]
  %v79 = vld [vmem:[%s0 + $0x1c0] sm:$0xff]
  %v80 = vld [vmem:[%s0 + $0x1c8] sm:$0xff]
  %v81 = vld [vmem:[%s0 + $0x1d0] sm:$0xff]
  %v82 = vld [vmem:[%s0 + $0x1d8] sm:$0xff]
  %v83 = vld [vmem:[%s0 + $0x1e0] sm:$0xff]
  %v84 = vld [vmem:[%s0 + $0x1e8] sm:$0xff]
  %v85 = vld [vmem:[%s0 + $0x1f0] sm:$0xff]
  %v86 = vld [vmem:[%s0 + $0x1f8] sm:$0xff]
  %v87 = vld [vmem:[%s0 + $0x200] sm:$0xff]
  %v88 = vld [vmem:[%s0 + $0x208] sm:$0xff]
  %v89 = vld [vmem:[%s0 + $0x210] sm:$0xff]
  %v90 = vld [vmem:[%s0 + $0x218] sm:$0xff]
  %v91 = vld [vmem:[%s0 + $0x220] sm:$0xff]
  %v92 = vld [vmem:[%s0 + $0x228] sm:$0xff]
  %v93 = vld [vmem:[%s0 + $0x230] sm:$0xff]
  %v94 = vld [vmem:[%s0 + $0x238] sm:$0xff]
  %v95 = vld [vmem:[%s0 + $0x240] sm:$0xff]
  %v96 = vld [vmem:[%s0 + $0x248] sm:$0xff]
  %v97 = vld [vmem:[%s0 + $0x250] sm:$0xff]
  %v98 = vld [vmem:[%s0 + $0x258] sm:$0xff]
  %v99 = vld [vmem:[%s0 + $0x260] sm:$0xff]
  %v100 = vld [vmem:[%s0 + $0x268] sm:$0xff]
  %v101 = vld [vmem:[%s0 + $0x270] sm:$0xff]
  %v102 = vld [vmem:[%s0 + $0x278] sm:$0xff]
  %v103 = vld [vmem:[%s0 + $0x280] sm:$0xff]
  %v104 = vld [vmem:[%s0 + $0x288] sm:$0xff]
  %v105 = vld [vmem:[%s0 + $0x290] sm:$0xff]
  %v106 = vld [vmem:[%s0 + $0x298] sm:$0xff]
  %v107 = vld [vmem:[%s0 + $0x2a0] sm:$0xff]
  %v108 = vld [vmem:[%s0 + $0x2a8] sm:$0xff]
  %v109 = vld [vmem:[%s0 + $0x2b0] sm:$0xff]
  %v110 = vld [vmem:[%s0 + $0x2b8] sm:$0xff]
  %v111 = vld [vmem:[%s0 + $0x2c0] sm:$0xff]
  %v112 = vld [vmem:[%s0 + $0x2c8] sm:$0xff]
  %v113 = vld [vmem:[%s0 + $0x2d0] sm:$0xff]
  %v114 = vld [vmem:[%s0 + $0x2d8] sm:$0xff]
  %v115 = vld [vmem:[%s0 + $0x2e0] sm:$0xff]
  %v116 = vld [vmem:[%s0 + $0x2e8] sm:$0xff]
  %v117 = vld [vmem:[%s0 + $0x2f0] sm:$0xff]
  %v118 = vld [vmem:[%s0 + $0x2f8] sm:$0xff]
  %v119 = vld [vmem:[%s0 + $0x300] sm:$0xff]
  %v120 = vld [vmem:[%s0 + $0x308] sm:$0xff]
  %v121 = vld [vmem:[%s0 + $0x310] sm:$0xff]
  %v122 = vld [vmem:[%s0 + $0x318] sm:$0xff]
  %v123 = vld [vmem:[%s0 + $0x320] sm:$0xff]
  %v124 = vld [vmem:[%s0 + $0x328] sm:$0xff]
  %v125 = vld [vmem:[%s0 + $0x330] sm:$0xff]
  %v126 = vld [vmem:[%s0 + $0x338] sm:$0xff]
  %v127 = vld [vmem:[%s0 + $0x340] sm:$0xff]
  %v128 = vld [vmem:[%s0 + $0x348] sm:$0xff]
  %v129 = vld [vmem:[%s0 + $0x350] sm:$0xff]
  %v130 = vld [vmem:[%s0 + $0x358] sm:$0xff]
  %v131 = vld [vmem:[%s0 + $0x360] sm:$0xff]
  %v132 = vld [vmem:[%s0 + $0x368] sm:$0xff]
  %v133 = vld [vmem:[%s0 + $0x370] sm:$0xff]
  %v134 = vld [vmem:[%s0 + $0x378] sm:$0xff]
  %v135 = vpack.c.bf16 %v30, %v23
  %v136 = vpack.c.bf16 %v31, %v24
  %v137 = vpack.c.bf16 %v32, %v25
  %v138 = vpack.c.bf16 %v33, %v26
  %v139 = vpack.c.bf16 %v34, %v27
  %v140 = vpack.c.bf16 %v35, %v28
  %v141 = vpack.c.bf16 %v36, %v29
  %v142 = vpack.c.bf16 %v44, %v37
  %v143 = vpack.c.bf16 %v45, %v38
  %v144 = vpack.c.bf16 %v46, %v39
  %v145 = vpack.c.bf16 %v47, %v40
  %v146 = vpack.c.bf16 %v48, %v41
  %v147 = vpack.c.bf16 %v49, %v42
  %v148 = vpack.c.bf16 %v50, %v43
  %v149 = vpack.c.bf16 %v58, %v51
  %v150 = vpack.c.bf16 %v59, %v52
  %v151 = vpack.c.bf16 %v60, %v53
  %v152 = vpack.c.bf16 %v61, %v54
  %v153 = vpack.c.bf16 %v62, %v55
  %v154 = vpack.c.bf16 %v63, %v56
  %v155 = vpack.c.bf16 %v64, %v57
  %v156 = vpack.c.bf16 %v72, %v65
  %v157 = vpack.c.bf16 %v73, %v66
  %v158 = vpack.c.bf16 %v74, %v67
  %v159 = vpack.c.bf16 %v75, %v68
  %v160 = vpack.c.bf16 %v76, %v69
  %v161 = vpack.c.bf16 %v77, %v70
  %v162 = vpack.c.bf16 %v78, %v71
  %v163 = vpack.c.bf16 %v86, %v79
  %v164 = vpack.c.bf16 %v87, %v80
  %v165 = vpack.c.bf16 %v88, %v81
  %v166 = vpack.c.bf16 %v89, %v82
  %v167 = vpack.c.bf16 %v90, %v83
  %v168 = vpack.c.bf16 %v91, %v84
  %v169 = vpack.c.bf16 %v92, %v85
  %v170 = vpack.c.bf16 %v100, %v93
  %v171 = vpack.c.bf16 %v101, %v94
  %v172 = vpack.c.bf16 %v102, %v95
  %v173 = vpack.c.bf16 %v103, %v96
  %v174 = vpack.c.bf16 %v104, %v97
  %v175 = vpack.c.bf16 %v105, %v98
  %v176 = vpack.c.bf16 %v106, %v99
  %v177 = vpack.c.bf16 %v114, %v107
  %v178 = vpack.c.bf16 %v115, %v108
  %v179 = vpack.c.bf16 %v116, %v109
  %v180 = vpack.c.bf16 %v117, %v110
  %v181 = vpack.c.bf16 %v118, %v111
  %v182 = vpack.c.bf16 %v119, %v112
  %v183 = vpack.c.bf16 %v120, %v113
  %v184 = vpack.c.bf16 %v128, %v121
  %v185 = vpack.c.bf16 %v129, %v122
  %v186 = vpack.c.bf16 %v130, %v123
  %v187 = vpack.c.bf16 %v131, %v124
  %v188 = vpack.c.bf16 %v132, %v125
  %v189 = vpack.c.bf16 %v133, %v126
  %v190 = vpack.c.bf16 %v134, %v127
  %v191 = vld [vmem:[%s1] sm:$0xff]
  %v192 = vld [vmem:[%s1 + $0x8] sm:$0xff]
  %v193 = vld [vmem:[%s1 + $0x10] sm:$0xff]
  %v194 = vld [vmem:[%s1 + $0x18] sm:$0xff]
  %v195 = vld [vmem:[%s1 + $0x20] sm:$0xff]
  %v196 = vld [vmem:[%s1 + $0x28] sm:$0xff]
  %v197 = vld [vmem:[%s1 + $0x30] sm:$0xff]
  %v198 = vld [vmem:[%s1 + $0x38] sm:$0xff]
  %v199 = vld [vmem:[%s1 + $0x40] sm:$0xff]
  %v200 = vld [vmem:[%s1 + $0x48] sm:$0xff]
  %v201 = vld [vmem:[%s1 + $0x50] sm:$0xff]
  %v202 = vld [vmem:[%s1 + $0x58] sm:$0xff]
  %v203 = vld [vmem:[%s1 + $0x60] sm:$0xff]
  %v204 = vld [vmem:[%s1 + $0x68] sm:$0xff]
  %v205 = vld [vmem:[%s1 + $0x70] sm:$0xff]
  %v206 = vld [vmem:[%s1 + $0x78] sm:$0xff]
  %v207 = vld [vmem:[%s1 + $0x80] sm:$0xff]
  %v208 = vld [vmem:[%s1 + $0x88] sm:$0xff]
  %v209 = vld [vmem:[%s1 + $0x90] sm:$0xff]
  %v210 = vld [vmem:[%s1 + $0x98] sm:$0xff]
  %v211 = vld [vmem:[%s1 + $0xa0] sm:$0xff]
  %v212 = vld [vmem:[%s1 + $0xa8] sm:$0xff]
  %v213 = vld [vmem:[%s1 + $0xb0] sm:$0xff]
  %v214 = vld [vmem:[%s1 + $0xb8] sm:$0xff]
  %v215 = vld [vmem:[%s1 + $0xc0] sm:$0xff]
  %v216 = vld [vmem:[%s1 + $0xc8] sm:$0xff]
  %v217 = vld [vmem:[%s1 + $0xd0] sm:$0xff]
  %v218 = vld [vmem:[%s1 + $0xd8] sm:$0xff]
  %v219 = vld [vmem:[%s1 + $0xe0] sm:$0xff]
  %v220 = vld [vmem:[%s1 + $0xe8] sm:$0xff]
  %v221 = vld [vmem:[%s1 + $0xf0] sm:$0xff]
  %v222 = vld [vmem:[%s1 + $0xf8] sm:$0xff]
  %v223 = vld [vmem:[%s1 + $0x100] sm:$0xff]
  %v224 = vld [vmem:[%s1 + $0x108] sm:$0xff]
  %v225 = vld [vmem:[%s1 + $0x110] sm:$0xff]
  %v226 = vld [vmem:[%s1 + $0x118] sm:$0xff]
  %v227 = vld [vmem:[%s1 + $0x120] sm:$0xff]
  %v228 = vld [vmem:[%s1 + $0x128] sm:$0xff]
  %v229 = vld [vmem:[%s1 + $0x130] sm:$0xff]
  %v230 = vld [vmem:[%s1 + $0x138] sm:$0xff]
  %v231 = vld [vmem:[%s1 + $0x140] sm:$0xff]
  %v232 = vld [vmem:[%s1 + $0x148] sm:$0xff]
  %v233 = vld [vmem:[%s1 + $0x150] sm:$0xff]
  %v234 = vld [vmem:[%s1 + $0x158] sm:$0xff]
  %v235 = vld [vmem:[%s1 + $0x160] sm:$0xff]
  %v236 = vld [vmem:[%s1 + $0x168] sm:$0xff]
  %v237 = vld [vmem:[%s1 + $0x170] sm:$0xff]
  %v238 = vld [vmem:[%s1 + $0x178] sm:$0xff]
  %v239 = vld [vmem:[%s1 + $0x180] sm:$0xff]
  %v240 = vld [vmem:[%s1 + $0x188] sm:$0xff]
  %v241 = vld [vmem:[%s1 + $0x190] sm:$0xff]
  %v242 = vld [vmem:[%s1 + $0x198] sm:$0xff]
  %v243 = vld [vmem:[%s1 + $0x1a0] sm:$0xff]
  %v244 = vld [vmem:[%s1 + $0x1a8] sm:$0xff]
  %v245 = vld [vmem:[%s1 + $0x1b0] sm:$0xff]
  %v246 = vld [vmem:[%s1 + $0x1b8] sm:$0xff]
  %v247 = vld [vmem:[%s1 + $0x1c0] sm:$0xff]
  %v248 = vld [vmem:[%s1 + $0x1c8] sm:$0xff]
  %v249 = vld [vmem:[%s1 + $0x1d0] sm:$0xff]
  %v250 = vld [vmem:[%s1 + $0x1d8] sm:$0xff]
  %v251 = vld [vmem:[%s1 + $0x1e0] sm:$0xff]
  %v252 = vld [vmem:[%s1 + $0x1e8] sm:$0xff]
  %v253 = vld [vmem:[%s1 + $0x1f0] sm:$0xff]
  %v254 = vld [vmem:[%s1 + $0x1f8] sm:$0xff]
  %v255 = vld [vmem:[%s1 + $0x200] sm:$0xff]
  %v256 = vld [vmem:[%s1 + $0x208] sm:$0xff]
  %v257 = vld [vmem:[%s1 + $0x210] sm:$0xff]
  %v258 = vld [vmem:[%s1 + $0x218] sm:$0xff]
  %v259 = vld [vmem:[%s1 + $0x220] sm:$0xff]
  %v260 = vld [vmem:[%s1 + $0x228] sm:$0xff]
  %v261 = vld [vmem:[%s1 + $0x230] sm:$0xff]
  %v262 = vld [vmem:[%s1 + $0x238] sm:$0xff]
  %v263 = vld [vmem:[%s1 + $0x240] sm:$0xff]
  %v264 = vld [vmem:[%s1 + $0x248] sm:$0xff]
  %v265 = vld [vmem:[%s1 + $0x250] sm:$0xff]
  %v266 = vld [vmem:[%s1 + $0x258] sm:$0xff]
  %v267 = vld [vmem:[%s1 + $0x260] sm:$0xff]
  %v268 = vld [vmem:[%s1 + $0x268] sm:$0xff]
  %v269 = vld [vmem:[%s1 + $0x270] sm:$0xff]
  %v270 = vld [vmem:[%s1 + $0x278] sm:$0xff]
  %v271 = vld [vmem:[%s1 + $0x280] sm:$0xff]
  %v272 = vld [vmem:[%s1 + $0x288] sm:$0xff]
  %v273 = vld [vmem:[%s1 + $0x290] sm:$0xff]
  %v274 = vld [vmem:[%s1 + $0x298] sm:$0xff]
  %v275 = vld [vmem:[%s1 + $0x2a0] sm:$0xff]
  %v276 = vld [vmem:[%s1 + $0x2a8] sm:$0xff]
  %v277 = vld [vmem:[%s1 + $0x2b0] sm:$0xff]
  %v278 = vld [vmem:[%s1 + $0x2b8] sm:$0xff]
  %v279 = vld [vmem:[%s1 + $0x2c0] sm:$0xff]
  %v280 = vld [vmem:[%s1 + $0x2c8] sm:$0xff]
  %v281 = vld [vmem:[%s1 + $0x2d0] sm:$0xff]
  %v282 = vld [vmem:[%s1 + $0x2d8] sm:$0xff]
  %v283 = vld [vmem:[%s1 + $0x2e0] sm:$0xff]
  %v284 = vld [vmem:[%s1 + $0x2e8] sm:$0xff]
  %v285 = vld [vmem:[%s1 + $0x2f0] sm:$0xff]
  %v286 = vld [vmem:[%s1 + $0x2f8] sm:$0xff]
  %v287 = vld [vmem:[%s1 + $0x300] sm:$0xff]
  %v288 = vld [vmem:[%s1 + $0x308] sm:$0xff]
  %v289 = vld [vmem:[%s2] sm:$0x3]
  %v291 = vlaneseq
  %v292 = vshrl.u32 %v291, 7
  %v293 = vsub.s32 0, %v292
  %v294 = vrot.slane %v289, %v293
  %v295 = vlaneseq
  %v296 = vshrl.u32 %v295, 7
  %v297 = vsub.s32 1, %v296
  %v298 = vrot.slane %v289, %v297
  %v399 = vunpack.c.l.b16 %v191
  %v400 = vunpack.c.h.b16 %v191
  %v401 = vunpack.c.l.b16 %v192
  %v402 = vunpack.c.h.b16 %v192
  %v403 = vunpack.c.l.b16 %v193
  %v404 = vunpack.c.h.b16 %v193
  %v405 = vunpack.c.l.b16 %v194
  %v406 = vunpack.c.h.b16 %v194
  %v407 = vunpack.c.l.b16 %v195
  %v408 = vunpack.c.h.b16 %v195
  %v409 = vunpack.c.l.b16 %v196
  %v410 = vunpack.c.h.b16 %v196
  %v411 = vunpack.c.l.b16 %v197
  %v412 = vunpack.c.h.b16 %v197
  %v413 = vunpack.c.l.b16 %v198
  %v414 = vunpack.c.h.b16 %v198
  %v415 = vunpack.c.l.b16 %v199
  %v416 = vunpack.c.h.b16 %v199
  %v417 = vunpack.c.l.b16 %v200
  %v418 = vunpack.c.h.b16 %v200
  %v419 = vunpack.c.l.b16 %v201
  %v420 = vunpack.c.h.b16 %v201
  %v421 = vunpack.c.l.b16 %v202
  %v422 = vunpack.c.h.b16 %v202
  %v423 = vunpack.c.l.b16 %v203
  %v424 = vunpack.c.h.b16 %v203
  %v425 = vunpack.c.l.b16 %v204
  %v426 = vunpack.c.h.b16 %v204
  %v427 = vunpack.c.l.b16 %v205
  %v428 = vunpack.c.h.b16 %v205
  %v429 = vunpack.c.l.b16 %v206
  %v430 = vunpack.c.h.b16 %v206
  %v431 = vunpack.c.l.b16 %v207
  %v432 = vunpack.c.h.b16 %v207
  %v433 = vunpack.c.l.b16 %v208
  %v434 = vunpack.c.h.b16 %v208
  %v435 = vunpack.c.l.b16 %v209
  %v436 = vunpack.c.h.b16 %v209
  %v437 = vunpack.c.l.b16 %v210
  %v438 = vunpack.c.h.b16 %v210
  %v439 = vunpack.c.l.b16 %v211
  %v440 = vunpack.c.h.b16 %v211
  %v441 = vunpack.c.l.b16 %v212
  %v442 = vunpack.c.h.b16 %v212
  %v443 = vunpack.c.l.b16 %v213
  %v444 = vunpack.c.h.b16 %v213
  %v445 = vunpack.c.l.b16 %v214
  %v446 = vunpack.c.h.b16 %v214
  %v447 = vunpack.c.l.b16 %v215
  %v448 = vunpack.c.h.b16 %v215
  %v449 = vunpack.c.l.b16 %v216
  %v450 = vunpack.c.h.b16 %v216
  %v451 = vunpack.c.l.b16 %v217
  %v452 = vunpack.c.h.b16 %v217
  %v453 = vunpack.c.l.b16 %v218
  %v454 = vunpack.c.h.b16 %v218
  %v455 = vunpack.c.l.b16 %v219
  %v456 = vunpack.c.h.b16 %v219
  %v457 = vunpack.c.l.b16 %v220
  %v458 = vunpack.c.h.b16 %v220
  %v459 = vunpack.c.l.b16 %v221
  %v460 = vunpack.c.h.b16 %v221
  %v461 = vunpack.c.l.b16 %v222
  %v462 = vunpack.c.h.b16 %v222
  %v463 = vunpack.c.l.b16 %v223
  %v464 = vunpack.c.h.b16 %v223
  %v465 = vunpack.c.l.b16 %v224
  %v466 = vunpack.c.h.b16 %v224
  %v467 = vunpack.c.l.b16 %v225
  %v468 = vunpack.c.h.b16 %v225
  %v469 = vunpack.c.l.b16 %v226
  %v470 = vunpack.c.h.b16 %v226
  %v471 = vunpack.c.l.b16 %v227
  %v472 = vunpack.c.h.b16 %v227
  %v473 = vunpack.c.l.b16 %v228
  %v474 = vunpack.c.h.b16 %v228
  %v475 = vunpack.c.l.b16 %v229
  %v476 = vunpack.c.h.b16 %v229
  %v477 = vunpack.c.l.b16 %v230
  %v478 = vunpack.c.h.b16 %v230
  %v479 = vunpack.c.l.b16 %v231
  %v480 = vunpack.c.h.b16 %v231
  %v481 = vunpack.c.l.b16 %v232
  %v482 = vunpack.c.h.b16 %v232
  %v483 = vunpack.c.l.b16 %v233
  %v484 = vunpack.c.h.b16 %v233
  %v485 = vunpack.c.l.b16 %v234
  %v486 = vunpack.c.h.b16 %v234
  %v487 = vunpack.c.l.b16 %v235
  %v488 = vunpack.c.h.b16 %v235
  %v489 = vunpack.c.l.b16 %v236
  %v490 = vunpack.c.h.b16 %v236
  %v491 = vunpack.c.l.b16 %v237
  %v492 = vunpack.c.h.b16 %v237
  %v493 = vunpack.c.l.b16 %v238
  %v494 = vunpack.c.h.b16 %v238
  %v495 = vunpack.c.l.b16 %v239
  %v496 = vunpack.c.h.b16 %v239
  %v497 = vunpack.c.l.b16 %v240
  %v498 = vunpack.c.h.b16 %v240
  %v499 = vunpack.c.l.b16 %v241
  %v500 = vunpack.c.h.b16 %v241
  %v501 = vunpack.c.l.b16 %v242
  %v502 = vunpack.c.h.b16 %v242
  %v503 = vunpack.c.l.b16 %v243
  %v504 = vunpack.c.h.b16 %v243
  %v505 = vunpack.c.l.b16 %v244
  %v506 = vunpack.c.h.b16 %v244
  %v507 = vunpack.c.l.b16 %v245
  %v508 = vunpack.c.h.b16 %v245
  %v509 = vunpack.c.l.b16 %v246
  %v510 = vunpack.c.h.b16 %v246
  %v511 = vunpack.c.l.b16 %v247
  %v512 = vunpack.c.h.b16 %v247
  %v513 = vunpack.c.l.b16 %v248
  %v514 = vunpack.c.h.b16 %v248
  %v515 = vunpack.c.l.b16 %v249
  %v516 = vunpack.c.h.b16 %v249
  %v517 = vunpack.c.l.b16 %v250
  %v518 = vunpack.c.h.b16 %v250
  %v519 = vunpack.c.l.b16 %v251
  %v520 = vunpack.c.h.b16 %v251
  %v521 = vunpack.c.l.b16 %v252
  %v522 = vunpack.c.h.b16 %v252
  %v523 = vunpack.c.l.b16 %v253
  %v524 = vunpack.c.h.b16 %v253
  %v525 = vunpack.c.l.b16 %v254
  %v526 = vunpack.c.h.b16 %v254
  %v527 = vunpack.c.l.b16 %v255
  %v528 = vunpack.c.h.b16 %v255
  %v529 = vunpack.c.l.b16 %v256
  %v530 = vunpack.c.h.b16 %v256
  %v531 = vunpack.c.l.b16 %v257
  %v532 = vunpack.c.h.b16 %v257
  %v533 = vunpack.c.l.b16 %v258
  %v534 = vunpack.c.h.b16 %v258
  %v535 = vunpack.c.l.b16 %v259
  %v536 = vunpack.c.h.b16 %v259
  %v537 = vunpack.c.l.b16 %v260
  %v538 = vunpack.c.h.b16 %v260
  %v539 = vunpack.c.l.b16 %v261
  %v540 = vunpack.c.h.b16 %v261
  %v541 = vunpack.c.l.b16 %v262
  %v542 = vunpack.c.h.b16 %v262
  %v543 = vunpack.c.l.b16 %v263
  %v544 = vunpack.c.h.b16 %v263
  %v545 = vunpack.c.l.b16 %v264
  %v546 = vunpack.c.h.b16 %v264
  %v547 = vunpack.c.l.b16 %v265
  %v548 = vunpack.c.h.b16 %v265
  %v549 = vunpack.c.l.b16 %v266
  %v550 = vunpack.c.h.b16 %v266
  %v551 = vunpack.c.l.b16 %v267
  %v552 = vunpack.c.h.b16 %v267
  %v553 = vunpack.c.l.b16 %v268
  %v554 = vunpack.c.h.b16 %v268
  %v555 = vunpack.c.l.b16 %v269
  %v556 = vunpack.c.h.b16 %v269
  %v557 = vunpack.c.l.b16 %v270
  %v558 = vunpack.c.h.b16 %v270
  %v559 = vunpack.c.l.b16 %v271
  %v560 = vunpack.c.h.b16 %v271
  %v561 = vunpack.c.l.b16 %v272
  %v562 = vunpack.c.h.b16 %v272
  %v563 = vunpack.c.l.b16 %v273
  %v564 = vunpack.c.h.b16 %v273
  %v565 = vunpack.c.l.b16 %v274
  %v566 = vunpack.c.h.b16 %v274
  %v567 = vunpack.c.l.b16 %v275
  %v568 = vunpack.c.h.b16 %v275
  %v569 = vunpack.c.l.b16 %v276
  %v570 = vunpack.c.h.b16 %v276
  %v571 = vunpack.c.l.b16 %v277
  %v572 = vunpack.c.h.b16 %v277
  %v573 = vunpack.c.l.b16 %v278
  %v574 = vunpack.c.h.b16 %v278
  %v575 = vunpack.c.l.b16 %v279
  %v576 = vunpack.c.h.b16 %v279
  %v577 = vunpack.c.l.b16 %v280
  %v578 = vunpack.c.h.b16 %v280
  %v579 = vunpack.c.l.b16 %v281
  %v580 = vunpack.c.h.b16 %v281
  %v581 = vunpack.c.l.b16 %v282
  %v582 = vunpack.c.h.b16 %v282
  %v583 = vunpack.c.l.b16 %v283
  %v584 = vunpack.c.h.b16 %v283
  %v585 = vunpack.c.l.b16 %v284
  %v586 = vunpack.c.h.b16 %v284
  %v587 = vunpack.c.l.b16 %v285
  %v588 = vunpack.c.h.b16 %v285
  %v589 = vunpack.c.l.b16 %v286
  %v590 = vunpack.c.h.b16 %v286
  %v591 = vunpack.c.l.b16 %v287
  %v592 = vunpack.c.h.b16 %v287
  %v593 = vunpack.c.l.b16 %v288
  %v594 = vunpack.c.h.b16 %v288
  %v595 = vpack.c.b16 %v401, %v399
  %v596 = vpack.c.b16 %v402, %v400
  %v597 = vpack.c.b16 %v405, %v403
  %v598 = vpack.c.b16 %v406, %v404
  %v599 = vpack.c.b16 %v409, %v407
  %v600 = vpack.c.b16 %v410, %v408
  %v601 = vpack.c.b16 %v413, %v411
  %v602 = vpack.c.b16 %v414, %v412
  %v603 = vpack.c.b16 %v417, %v415
  %v604 = vpack.c.b16 %v418, %v416
  %v605 = vpack.c.b16 %v421, %v419
  %v606 = vpack.c.b16 %v422, %v420
  %v607 = vpack.c.b16 %v425, %v423
  %v608 = vpack.c.b16 %v426, %v424
  %v609 = vpack.c.b16 %v429, %v427
  %v610 = vpack.c.b16 %v430, %v428
  %v611 = vpack.c.b16 %v433, %v431
  %v612 = vpack.c.b16 %v434, %v432
  %v613 = vpack.c.b16 %v437, %v435
  %v614 = vpack.c.b16 %v438, %v436
  %v615 = vpack.c.b16 %v441, %v439
  %v616 = vpack.c.b16 %v442, %v440
  %v617 = vpack.c.b16 %v445, %v443
  %v618 = vpack.c.b16 %v446, %v444
  %v619 = vpack.c.b16 %v449, %v447
  %v620 = vpack.c.b16 %v450, %v448
  %v621 = vpack.c.b16 %v453, %v451
  %v622 = vpack.c.b16 %v454, %v452
  %v623 = vpack.c.b16 %v457, %v455
  %v624 = vpack.c.b16 %v458, %v456
  %v625 = vpack.c.b16 %v461, %v459
  %v626 = vpack.c.b16 %v462, %v460
  %v627 = vpack.c.b16 %v465, %v463
  %v628 = vpack.c.b16 %v466, %v464
  %v629 = vpack.c.b16 %v469, %v467
  %v630 = vpack.c.b16 %v470, %v468
  %v631 = vpack.c.b16 %v473, %v471
  %v632 = vpack.c.b16 %v474, %v472
  %v633 = vpack.c.b16 %v477, %v475
  %v634 = vpack.c.b16 %v478, %v476
  %v635 = vpack.c.b16 %v481, %v479
  %v636 = vpack.c.b16 %v482, %v480
  %v637 = vpack.c.b16 %v485, %v483
  %v638 = vpack.c.b16 %v486, %v484
  %v639 = vpack.c.b16 %v489, %v487
  %v640 = vpack.c.b16 %v490, %v488
  %v641 = vpack.c.b16 %v493, %v491
  %v642 = vpack.c.b16 %v494, %v492
  %v643 = vpack.c.b16 %v497, %v495
  %v644 = vpack.c.b16 %v498, %v496
  %v645 = vpack.c.b16 %v501, %v499
  %v646 = vpack.c.b16 %v502, %v500
  %v647 = vpack.c.b16 %v505, %v503
  %v648 = vpack.c.b16 %v506, %v504
  %v649 = vpack.c.b16 %v509, %v507
  %v650 = vpack.c.b16 %v510, %v508
  %v651 = vpack.c.b16 %v513, %v511
  %v652 = vpack.c.b16 %v514, %v512
  %v653 = vpack.c.b16 %v517, %v515
  %v654 = vpack.c.b16 %v518, %v516
  %v655 = vpack.c.b16 %v521, %v519
  %v656 = vpack.c.b16 %v522, %v520
  %v657 = vpack.c.b16 %v525, %v523
  %v658 = vpack.c.b16 %v526, %v524
  %v659 = vpack.c.b16 %v529, %v527
  %v660 = vpack.c.b16 %v530, %v528
  %v661 = vpack.c.b16 %v533, %v531
  %v662 = vpack.c.b16 %v534, %v532
  %v663 = vpack.c.b16 %v537, %v535
  %v664 = vpack.c.b16 %v538, %v536
  %v665 = vpack.c.b16 %v541, %v539
  %v666 = vpack.c.b16 %v542, %v540
  %v667 = vpack.c.b16 %v545, %v543
  %v668 = vpack.c.b16 %v546, %v544
  %v669 = vpack.c.b16 %v549, %v547
  %v670 = vpack.c.b16 %v550, %v548
  %v671 = vpack.c.b16 %v553, %v551
  %v672 = vpack.c.b16 %v554, %v552
  %v673 = vpack.c.b16 %v557, %v555
  %v674 = vpack.c.b16 %v558, %v556
  %v675 = vpack.c.b16 %v561, %v559
  %v676 = vpack.c.b16 %v562, %v560
  %v677 = vpack.c.b16 %v565, %v563
  %v678 = vpack.c.b16 %v566, %v564
  %v679 = vpack.c.b16 %v569, %v567
  %v680 = vpack.c.b16 %v570, %v568
  %v681 = vpack.c.b16 %v573, %v571
  %v682 = vpack.c.b16 %v574, %v572
  %v683 = vpack.c.b16 %v577, %v575
  %v684 = vpack.c.b16 %v578, %v576
  %v685 = vpack.c.b16 %v581, %v579
  %v686 = vpack.c.b16 %v582, %v580
  %v687 = vpack.c.b16 %v585, %v583
  %v688 = vpack.c.b16 %v586, %v584
  %v689 = vpack.c.b16 %v589, %v587
  %v690 = vpack.c.b16 %v590, %v588
  %v691 = vpack.c.b16 %v593, %v591
  %v692 = vpack.c.b16 %v594, %v592
  %vm791 = vcmask 130048
  %v793 = vsel %vm791, %v141, 0
  %v796 = vsel %vm791, %v148, 0
  %v799 = vsel %vm791, %v155, 0
  %v802 = vsel %vm791, %v162, 0
  %v805 = vsel %vm791, %v169, 0
  %v808 = vsel %vm791, %v176, 0
  %v811 = vsel %vm791, %v183, 0
  %v814 = vsel %vm791, %v190, 0
  %816 = vmatprep.subr.bf16.mxu0 %v610
  %817 = vmatpush1.bf16.msra.mxu0 %v609
  %818 = vmatprep.subr.bf16.mxu0 %v608
  %819 = vmatpush1.bf16.msra.mxu0 %v607
  %820 = vmatprep.subr.bf16.mxu0 %v606
  %821 = vmatpush1.bf16.msra.mxu0 %v605
  %822 = vmatprep.subr.bf16.mxu0 %v604
  %823 = vmatpush1.bf16.msra.mxu0 %v603
  %824 = vmatprep.subr.bf16.mxu0 %v602
  %825 = vmatpush1.bf16.msra.mxu0 %v601
  %826 = vmatprep.subr.bf16.mxu0 %v600
  %827 = vmatpush1.bf16.msra.mxu0 %v599
  %828 = vmatprep.subr.bf16.mxu0 %v598
  %829 = vmatpush1.bf16.msra.mxu0 %v597
  %830 = vmatprep.subr.bf16.mxu0 %v596
  %831 = vmatpush1.bf16.msra.mxu0 %v595
  %832 = vmatprep.subr.bf16.mxu0 %v626
  %833 = vmatpush2.bf16.msra.mxu0 %v625
  %834 = vmatprep.subr.bf16.mxu0 %v624
  %835 = vmatpush2.bf16.msra.mxu0 %v623
  %836 = vmatprep.subr.bf16.mxu0 %v622
  %837 = vmatpush2.bf16.msra.mxu0 %v621
  %838 = vmatprep.subr.bf16.mxu0 %v620
  %839 = vmatpush2.bf16.msra.mxu0 %v619
  %840 = vmatprep.subr.bf16.mxu0 %v618
  %841 = vmatpush2.bf16.msra.mxu0 %v617
  %842 = vmatprep.subr.bf16.mxu0 %v616
  %843 = vmatpush2.bf16.msra.mxu0 %v615
  %844 = vmatprep.subr.bf16.mxu0 %v614
  %845 = vmatpush2.bf16.msra.mxu0 %v613
  %846 = vmatprep.subr.bf16.mxu0 %v612
  %847 = vmatpush2.bf16.msra.mxu0 %v611
  %848 = vmatprep.mubr.bf16.mxu0 %v136
  %849 = vmatmul.mubr.bf16.gmra.mxu0 %v135
  %v850 = vpop.f32.mrf.mxu0
  %v851 = vadd.f32 %v294, %v850
  %v852 = vpop.f32.mrf.mxu0
  %v853 = vadd.f32 %v298, %v852
  %v854 = vpop.f32.mrf.mxu0
  %v855 = vadd.f32 %v294, %v854
  %v856 = vpop.f32.mrf.mxu0
  %v857 = vadd.f32 %v298, %v856
  %858 = vmatprep.mubr.bf16.mxu0 %v143
  %859 = vmatmul.mubr.bf16.gmra.mxu0 %v142
  %v860 = vpop.f32.mrf.mxu0
  %v861 = vadd.f32 %v294, %v860
  %v862 = vpop.f32.mrf.mxu0
  %v863 = vadd.f32 %v298, %v862
  %v864 = vpop.f32.mrf.mxu0
  %v865 = vadd.f32 %v294, %v864
  %v866 = vpop.f32.mrf.mxu0
  %v867 = vadd.f32 %v298, %v866
  %868 = vmatprep.mubr.bf16.mxu0 %v150
  %869 = vmatmul.mubr.bf16.gmra.mxu0 %v149
  %v870 = vpop.f32.mrf.mxu0
  %v871 = vadd.f32 %v294, %v870
  %v872 = vpop.f32.mrf.mxu0
  %v873 = vadd.f32 %v298, %v872
  %v874 = vpop.f32.mrf.mxu0
  %v875 = vadd.f32 %v294, %v874
  %v876 = vpop.f32.mrf.mxu0
  %v877 = vadd.f32 %v298, %v876
  %878 = vmatprep.mubr.bf16.mxu0 %v157
  %879 = vmatmul.mubr.bf16.gmra.mxu0 %v156
  %v880 = vpop.f32.mrf.mxu0
  %v881 = vadd.f32 %v294, %v880
  %v882 = vpop.f32.mrf.mxu0
  %v883 = vadd.f32 %v298, %v882
  %v884 = vpop.f32.mrf.mxu0
  %v885 = vadd.f32 %v294, %v884
  %v886 = vpop.f32.mrf.mxu0
  %v887 = vadd.f32 %v298, %v886
  %888 = vmatprep.mubr.bf16.mxu0 %v164
  %889 = vmatmul.mubr.bf16.gmra.mxu0 %v163
  %v890 = vpop.f32.mrf.mxu0
  %v891 = vadd.f32 %v294, %v890
  %v892 = vpop.f32.mrf.mxu0
  %v893 = vadd.f32 %v298, %v892
  %v894 = vpop.f32.mrf.mxu0
  %v895 = vadd.f32 %v294, %v894
  %v896 = vpop.f32.mrf.mxu0
  %v897 = vadd.f32 %v298, %v896
  %898 = vmatprep.mubr.bf16.mxu0 %v171
  %899 = vmatmul.mubr.bf16.gmra.mxu0 %v170
  %v900 = vpop.f32.mrf.mxu0
  %v901 = vadd.f32 %v294, %v900
  %v902 = vpop.f32.mrf.mxu0
  %v903 = vadd.f32 %v298, %v902
  %v904 = vpop.f32.mrf.mxu0
  %v905 = vadd.f32 %v294, %v904
  %v906 = vpop.f32.mrf.mxu0
  %v907 = vadd.f32 %v298, %v906
  %908 = vmatprep.mubr.bf16.mxu0 %v178
  %909 = vmatmul.mubr.bf16.gmra.mxu0 %v177
  %v910 = vpop.f32.mrf.mxu0
  %v911 = vadd.f32 %v294, %v910
  %v912 = vpop.f32.mrf.mxu0
  %v913 = vadd.f32 %v298, %v912
  %v914 = vpop.f32.mrf.mxu0
  %v915 = vadd.f32 %v294, %v914
  %v916 = vpop.f32.mrf.mxu0
  %v917 = vadd.f32 %v298, %v916
  %918 = vmatprep.mubr.bf16.mxu0 %v185
  %919 = vmatmul.mubr.bf16.gmra.mxu0 %v184
  %v920 = vpop.f32.mrf.mxu0
  %v921 = vadd.f32 %v294, %v920
  %v922 = vpop.f32.mrf.mxu0
  %v923 = vadd.f32 %v298, %v922
  %v924 = vpop.f32.mrf.mxu0
  %v925 = vadd.f32 %v294, %v924
  %v926 = vpop.f32.mrf.mxu0
  %v927 = vadd.f32 %v298, %v926
  %928 = vdwg.mxu0
  %929 = vmatprep.subr.bf16.mxu0 %v642
  %930 = vmatpush1.bf16.msra.mxu0 %v641
  %931 = vmatprep.subr.bf16.mxu0 %v640
  %932 = vmatpush1.bf16.msra.mxu0 %v639
  %933 = vmatprep.subr.bf16.mxu0 %v638
  %934 = vmatpush1.bf16.msra.mxu0 %v637
  %935 = vmatprep.subr.bf16.mxu0 %v636
  %936 = vmatpush1.bf16.msra.mxu0 %v635
  %937 = vmatprep.subr.bf16.mxu0 %v634
  %938 = vmatpush1.bf16.msra.mxu0 %v633
  %939 = vmatprep.subr.bf16.mxu0 %v632
  %940 = vmatpush1.bf16.msra.mxu0 %v631
  %941 = vmatprep.subr.bf16.mxu0 %v630
  %942 = vmatpush1.bf16.msra.mxu0 %v629
  %943 = vmatprep.subr.bf16.mxu0 %v628
  %944 = vmatpush1.bf16.msra.mxu0 %v627
  %945 = vmatprep.subr.bf16.mxu0 %v658
  %946 = vmatpush2.bf16.msra.mxu0 %v657
  %947 = vmatprep.subr.bf16.mxu0 %v656
  %948 = vmatpush2.bf16.msra.mxu0 %v655
  %949 = vmatprep.subr.bf16.mxu0 %v654
  %950 = vmatpush2.bf16.msra.mxu0 %v653
  %951 = vmatprep.subr.bf16.mxu0 %v652
  %952 = vmatpush2.bf16.msra.mxu0 %v651
  %953 = vmatprep.subr.bf16.mxu0 %v650
  %954 = vmatpush2.bf16.msra.mxu0 %v649
  %955 = vmatprep.subr.bf16.mxu0 %v648
  %956 = vmatpush2.bf16.msra.mxu0 %v647
  %957 = vmatprep.subr.bf16.mxu0 %v646
  %958 = vmatpush2.bf16.msra.mxu0 %v645
  %959 = vmatprep.subr.bf16.mxu0 %v644
  %960 = vmatpush2.bf16.msra.mxu0 %v643
  %961 = vmatprep.mubr.bf16.mxu0 %v138
  %962 = vmatmul.mubr.bf16.gmra.mxu0 %v137
  %v963 = vpop.f32.mrf.mxu0
  %v964 = vadd.f32 %v851, %v963
  %v965 = vpop.f32.mrf.mxu0
  %v966 = vadd.f32 %v853, %v965
  %v967 = vpop.f32.mrf.mxu0
  %v968 = vadd.f32 %v855, %v967
  %v969 = vpop.f32.mrf.mxu0
  %v970 = vadd.f32 %v857, %v969
  %971 = vmatprep.mubr.bf16.mxu0 %v145
  %972 = vmatmul.mubr.bf16.gmra.mxu0 %v144
  %v973 = vpop.f32.mrf.mxu0
  %v974 = vadd.f32 %v861, %v973
  %v975 = vpop.f32.mrf.mxu0
  %v976 = vadd.f32 %v863, %v975
  %v977 = vpop.f32.mrf.mxu0
  %v978 = vadd.f32 %v865, %v977
  %v979 = vpop.f32.mrf.mxu0
  %v980 = vadd.f32 %v867, %v979
  %981 = vmatprep.mubr.bf16.mxu0 %v152
  %982 = vmatmul.mubr.bf16.gmra.mxu0 %v151
  %v983 = vpop.f32.mrf.mxu0
  %v984 = vadd.f32 %v871, %v983
  %v985 = vpop.f32.mrf.mxu0
  %v986 = vadd.f32 %v873, %v985
  %v987 = vpop.f32.mrf.mxu0
  %v988 = vadd.f32 %v875, %v987
  %v989 = vpop.f32.mrf.mxu0
  %v990 = vadd.f32 %v877, %v989
  %991 = vmatprep.mubr.bf16.mxu0 %v159
  %992 = vmatmul.mubr.bf16.gmra.mxu0 %v158
  %v993 = vpop.f32.mrf.mxu0
  %v994 = vadd.f32 %v881, %v993
  %v995 = vpop.f32.mrf.mxu0
  %v996 = vadd.f32 %v883, %v995
  %v997 = vpop.f32.mrf.mxu0
  %v998 = vadd.f32 %v885, %v997
  %v999 = vpop.f32.mrf.mxu0
  %v1000 = vadd.f32 %v887, %v999
  %1001 = vmatprep.mubr.bf16.mxu0 %v166
  %1002 = vmatmul.mubr.bf16.gmra.mxu0 %v165
  %v1003 = vpop.f32.mrf.mxu0
  %v1004 = vadd.f32 %v891, %v1003
  %v1005 = vpop.f32.mrf.mxu0
  %v1006 = vadd.f32 %v893, %v1005
  %v1007 = vpop.f32.mrf.mxu0
  %v1008 = vadd.f32 %v895, %v1007
  %v1009 = vpop.f32.mrf.mxu0
  %v1010 = vadd.f32 %v897, %v1009
  %1011 = vmatprep.mubr.bf16.mxu0 %v173
  %1012 = vmatmul.mubr.bf16.gmra.mxu0 %v172
  %v1013 = vpop.f32.mrf.mxu0
  %v1014 = vadd.f32 %v901, %v1013
  %v1015 = vpop.f32.mrf.mxu0
  %v1016 = vadd.f32 %v903, %v1015
  %v1017 = vpop.f32.mrf.mxu0
  %v1018 = vadd.f32 %v905, %v1017
  %v1019 = vpop.f32.mrf.mxu0
  %v1020 = vadd.f32 %v907, %v1019
  %1021 = vmatprep.mubr.bf16.mxu0 %v180
  %1022 = vmatmul.mubr.bf16.gmra.mxu0 %v179
  %v1023 = vpop.f32.mrf.mxu0
  %v1024 = vadd.f32 %v911, %v1023
  %v1025 = vpop.f32.mrf.mxu0
  %v1026 = vadd.f32 %v913, %v1025
  %v1027 = vpop.f32.mrf.mxu0
  %v1028 = vadd.f32 %v915, %v1027
  %v1029 = vpop.f32.mrf.mxu0
  %v1030 = vadd.f32 %v917, %v1029
  %1031 = vmatprep.mubr.bf16.mxu0 %v187
  %1032 = vmatmul.mubr.bf16.gmra.mxu0 %v186
  %v1033 = vpop.f32.mrf.mxu0
  %v1034 = vadd.f32 %v921, %v1033
  %v1035 = vpop.f32.mrf.mxu0
  %v1036 = vadd.f32 %v923, %v1035
  %v1037 = vpop.f32.mrf.mxu0
  %v1038 = vadd.f32 %v925, %v1037
  %v1039 = vpop.f32.mrf.mxu0
  %v1040 = vadd.f32 %v927, %v1039
  %1041 = vdwg.mxu0
  %1042 = vmatprep.subr.bf16.mxu0 %v674
  %1043 = vmatpush1.bf16.msra.mxu0 %v673
  %1044 = vmatprep.subr.bf16.mxu0 %v672
  %1045 = vmatpush1.bf16.msra.mxu0 %v671
  %1046 = vmatprep.subr.bf16.mxu0 %v670
  %1047 = vmatpush1.bf16.msra.mxu0 %v669
  %1048 = vmatprep.subr.bf16.mxu0 %v668
  %1049 = vmatpush1.bf16.msra.mxu0 %v667
  %1050 = vmatprep.subr.bf16.mxu0 %v666
  %1051 = vmatpush1.bf16.msra.mxu0 %v665
  %1052 = vmatprep.subr.bf16.mxu0 %v664
  %1053 = vmatpush1.bf16.msra.mxu0 %v663
  %1054 = vmatprep.subr.bf16.mxu0 %v662
  %1055 = vmatpush1.bf16.msra.mxu0 %v661
  %1056 = vmatprep.subr.bf16.mxu0 %v660
  %1057 = vmatpush1.bf16.msra.mxu0 %v659
  %1058 = vmatprep.subr.bf16.mxu0 %v690
  %1059 = vmatpush2.bf16.msra.mxu0 %v689
  %1060 = vmatprep.subr.bf16.mxu0 %v688
  %1061 = vmatpush2.bf16.msra.mxu0 %v687
  %1062 = vmatprep.subr.bf16.mxu0 %v686
  %1063 = vmatpush2.bf16.msra.mxu0 %v685
  %1064 = vmatprep.subr.bf16.mxu0 %v684
  %1065 = vmatpush2.bf16.msra.mxu0 %v683
  %1066 = vmatprep.subr.bf16.mxu0 %v682
  %1067 = vmatpush2.bf16.msra.mxu0 %v681
  %1068 = vmatprep.subr.bf16.mxu0 %v680
  %1069 = vmatpush2.bf16.msra.mxu0 %v679
  %1070 = vmatprep.subr.bf16.mxu0 %v678
  %1071 = vmatpush2.bf16.msra.mxu0 %v677
  %1072 = vmatprep.subr.bf16.mxu0 %v676
  %1073 = vmatpush2.bf16.msra.mxu0 %v675
  %1074 = vmatprep.mubr.bf16.mxu0 %v140
  %1075 = vmatmul.mubr.bf16.gmra.mxu0 %v139
  %v1076 = vpop.f32.mrf.mxu0
  %v1077 = vadd.f32 %v964, %v1076
  %v1078 = vpop.f32.mrf.mxu0
  %v1079 = vadd.f32 %v966, %v1078
  %v1080 = vpop.f32.mrf.mxu0
  %v1081 = vadd.f32 %v968, %v1080
  %v1082 = vpop.f32.mrf.mxu0
  %v1083 = vadd.f32 %v970, %v1082
  %1084 = vmatprep.mubr.bf16.mxu0 %v147
  %1085 = vmatmul.mubr.bf16.gmra.mxu0 %v146
  %v1086 = vpop.f32.mrf.mxu0
  %v1087 = vadd.f32 %v974, %v1086
  %v1088 = vpop.f32.mrf.mxu0
  %v1089 = vadd.f32 %v976, %v1088
  %v1090 = vpop.f32.mrf.mxu0
  %v1091 = vadd.f32 %v978, %v1090
  %v1092 = vpop.f32.mrf.mxu0
  %v1093 = vadd.f32 %v980, %v1092
  %1094 = vmatprep.mubr.bf16.mxu0 %v154
  %1095 = vmatmul.mubr.bf16.gmra.mxu0 %v153
  %v1096 = vpop.f32.mrf.mxu0
  %v1097 = vadd.f32 %v984, %v1096
  %v1098 = vpop.f32.mrf.mxu0
  %v1099 = vadd.f32 %v986, %v1098
  %v1100 = vpop.f32.mrf.mxu0
  %v1101 = vadd.f32 %v988, %v1100
  %v1102 = vpop.f32.mrf.mxu0
  %v1103 = vadd.f32 %v990, %v1102
  %1104 = vmatprep.mubr.bf16.mxu0 %v161
  %1105 = vmatmul.mubr.bf16.gmra.mxu0 %v160
  %v1106 = vpop.f32.mrf.mxu0
  %v1107 = vadd.f32 %v994, %v1106
  %v1108 = vpop.f32.mrf.mxu0
  %v1109 = vadd.f32 %v996, %v1108
  %v1110 = vpop.f32.mrf.mxu0
  %v1111 = vadd.f32 %v998, %v1110
  %v1112 = vpop.f32.mrf.mxu0
  %v1113 = vadd.f32 %v1000, %v1112
  %1114 = vmatprep.mubr.bf16.mxu0 %v168
  %1115 = vmatmul.mubr.bf16.gmra.mxu0 %v167
  %v1116 = vpop.f32.mrf.mxu0
  %v1117 = vadd.f32 %v1004, %v1116
  %v1118 = vpop.f32.mrf.mxu0
  %v1119 = vadd.f32 %v1006, %v1118
  %v1120 = vpop.f32.mrf.mxu0
  %v1121 = vadd.f32 %v1008, %v1120
  %v1122 = vpop.f32.mrf.mxu0
  %v1123 = vadd.f32 %v1010, %v1122
  %1124 = vmatprep.mubr.bf16.mxu0 %v175
  %1125 = vmatmul.mubr.bf16.gmra.mxu0 %v174
  %v1126 = vpop.f32.mrf.mxu0
  %v1127 = vadd.f32 %v1014, %v1126
  %v1128 = vpop.f32.mrf.mxu0
  %v1129 = vadd.f32 %v1016, %v1128
  %v1130 = vpop.f32.mrf.mxu0
  %v1131 = vadd.f32 %v1018, %v1130
  %v1132 = vpop.f32.mrf.mxu0
  %v1133 = vadd.f32 %v1020, %v1132
  %1134 = vmatprep.mubr.bf16.mxu0 %v182
  %1135 = vmatmul.mubr.bf16.gmra.mxu0 %v181
  %v1136 = vpop.f32.mrf.mxu0
  %v1137 = vadd.f32 %v1024, %v1136
  %v1138 = vpop.f32.mrf.mxu0
  %v1139 = vadd.f32 %v1026, %v1138
  %v1140 = vpop.f32.mrf.mxu0
  %v1141 = vadd.f32 %v1028, %v1140
  %v1142 = vpop.f32.mrf.mxu0
  %v1143 = vadd.f32 %v1030, %v1142
  %1144 = vmatprep.mubr.bf16.mxu0 %v189
  %1145 = vmatmul.mubr.bf16.gmra.mxu0 %v188
  %v1146 = vpop.f32.mrf.mxu0
  %v1147 = vadd.f32 %v1034, %v1146
  %v1148 = vpop.f32.mrf.mxu0
  %v1149 = vadd.f32 %v1036, %v1148
  %v1150 = vpop.f32.mrf.mxu0
  %v1151 = vadd.f32 %v1038, %v1150
  %v1152 = vpop.f32.mrf.mxu0
  %v1153 = vadd.f32 %v1040, %v1152
  %1154 = vdwg.mxu0
  %1155 = vmatprep.subr.bf16.mxu0 0
  %1156 = vmatpush1.bf16.msra.mxu0 0
  %1157 = vmatprep.subr.bf16.mxu0 0
  %1158 = vmatpush1.bf16.msra.mxu0 0
  %1159 = vmatprep.subr.bf16.mxu0 0
  %1160 = vmatpush1.bf16.msra.mxu0 0
  %1161 = vmatprep.subr.bf16.mxu0 0
  %1162 = vmatpush1.bf16.msra.mxu0 0
  %1163 = vmatprep.subr.bf16.mxu0 0
  %1164 = vmatpush1.bf16.msra.mxu0 0
  %1165 = vmatprep.subr.bf16.mxu0 0
  %1166 = vmatpush1.bf16.msra.mxu0 0
  %1167 = vmatprep.subr.bf16.mxu0 0
  %1168 = vmatpush1.bf16.msra.mxu0 0
  %1169 = vmatprep.subr.bf16.mxu0 %v692
  %1170 = vmatpush1.bf16.msra.mxu0 %v691
  %1171 = vmatprep.subr.bf16.mxu0 0
  %1172 = vmatpush2.bf16.msra.mxu0 0
  %1173 = vmatprep.subr.bf16.mxu0 0
  %1174 = vmatpush2.bf16.msra.mxu0 0
  %1175 = vmatprep.subr.bf16.mxu0 0
  %1176 = vmatpush2.bf16.msra.mxu0 0
  %1177 = vmatprep.subr.bf16.mxu0 0
  %1178 = vmatpush2.bf16.msra.mxu0 0
  %1179 = vmatprep.subr.bf16.mxu0 0
  %1180 = vmatpush2.bf16.msra.mxu0 0
  %1181 = vmatprep.subr.bf16.mxu0 0
  %1182 = vmatpush2.bf16.msra.mxu0 0
  %1183 = vmatprep.subr.bf16.mxu0 0
  %1184 = vmatpush2.bf16.msra.mxu0 0
  %1185 = vmatprep.subr.bf16.mxu0 0
  %1186 = vmatpush2.bf16.msra.mxu0 0
  %1187 = vmatprep.mubr.bf16.mxu0 0
  %1188 = vmatmul.mubr.bf16.gmra.mxu0 %v793
  %v1189 = vpop.f32.mrf.mxu0
  %v1190 = vadd.f32 %v1077, %v1189
  %v1191 = vpop.f32.mrf.mxu0
  %v1192 = vadd.f32 %v1079, %v1191
  %v1193 = vpop.f32.mrf.mxu0
  %v1194 = vadd.f32 %v1081, %v1193
  %v1195 = vpop.f32.mrf.mxu0
  %v1196 = vadd.f32 %v1083, %v1195
  %1197 = vmatprep.mubr.bf16.mxu0 0
  %1198 = vmatmul.mubr.bf16.gmra.mxu0 %v796
  %v1199 = vpop.f32.mrf.mxu0
  %v1200 = vadd.f32 %v1087, %v1199
  %v1201 = vpop.f32.mrf.mxu0
  %v1202 = vadd.f32 %v1089, %v1201
  %v1203 = vpop.f32.mrf.mxu0
  %v1204 = vadd.f32 %v1091, %v1203
  %v1205 = vpop.f32.mrf.mxu0
  %v1206 = vadd.f32 %v1093, %v1205
  %1207 = vmatprep.mubr.bf16.mxu0 0
  %1208 = vmatmul.mubr.bf16.gmra.mxu0 %v799
  %v1209 = vpop.f32.mrf.mxu0
  %v1210 = vadd.f32 %v1097, %v1209
  %v1211 = vpop.f32.mrf.mxu0
  %v1212 = vadd.f32 %v1099, %v1211
  %v1213 = vpop.f32.mrf.mxu0
  %v1214 = vadd.f32 %v1101, %v1213
  %v1215 = vpop.f32.mrf.mxu0
  %v1216 = vadd.f32 %v1103, %v1215
  %1217 = vmatprep.mubr.bf16.mxu0 0
  %1218 = vmatmul.mubr.bf16.gmra.mxu0 %v802
  %v1219 = vpop.f32.mrf.mxu0
  %v1220 = vadd.f32 %v1107, %v1219
  %v1221 = vpop.f32.mrf.mxu0
  %v1222 = vadd.f32 %v1109, %v1221
  %v1223 = vpop.f32.mrf.mxu0
  %v1224 = vadd.f32 %v1111, %v1223
  %v1225 = vpop.f32.mrf.mxu0
  %v1226 = vadd.f32 %v1113, %v1225
  %1227 = vmatprep.mubr.bf16.mxu0 0
  %1228 = vmatmul.mubr.bf16.gmra.mxu0 %v805
  %v1229 = vpop.f32.mrf.mxu0
  %v1230 = vadd.f32 %v1117, %v1229
  %v1231 = vpop.f32.mrf.mxu0
  %v1232 = vadd.f32 %v1119, %v1231
  %v1233 = vpop.f32.mrf.mxu0
  %v1234 = vadd.f32 %v1121, %v1233
  %v1235 = vpop.f32.mrf.mxu0
  %v1236 = vadd.f32 %v1123, %v1235
  %1237 = vmatprep.mubr.bf16.mxu0 0
  %1238 = vmatmul.mubr.bf16.gmra.mxu0 %v808
  %v1239 = vpop.f32.mrf.mxu0
  %v1240 = vadd.f32 %v1127, %v1239
  %v1241 = vpop.f32.mrf.mxu0
  %v1242 = vadd.f32 %v1129, %v1241
  %v1243 = vpop.f32.mrf.mxu0
  %v1244 = vadd.f32 %v1131, %v1243
  %v1245 = vpop.f32.mrf.mxu0
  %v1246 = vadd.f32 %v1133, %v1245
  %1247 = vmatprep.mubr.bf16.mxu0 0
  %1248 = vmatmul.mubr.bf16.gmra.mxu0 %v811
  %v1249 = vpop.f32.mrf.mxu0
  %v1250 = vadd.f32 %v1137, %v1249
  %v1251 = vpop.f32.mrf.mxu0
  %v1252 = vadd.f32 %v1139, %v1251
  %v1253 = vpop.f32.mrf.mxu0
  %v1254 = vadd.f32 %v1141, %v1253
  %v1255 = vpop.f32.mrf.mxu0
  %v1256 = vadd.f32 %v1143, %v1255
  %1257 = vmatprep.mubr.bf16.mxu0 0
  %1258 = vmatmul.mubr.bf16.gmra.mxu0 %v814
  %v1259 = vpop.f32.mrf.mxu0
  %v1260 = vadd.f32 %v1147, %v1259
  %v1261 = vpop.f32.mrf.mxu0
  %v1262 = vadd.f32 %v1149, %v1261
  %v1263 = vpop.f32.mrf.mxu0
  %v1264 = vadd.f32 %v1151, %v1263
  %v1265 = vpop.f32.mrf.mxu0
  %v1266 = vadd.f32 %v1153, %v1265
  %1267 = vdwg.mxu0
  %vm1268 = vcmp.gt.f32.partialorder %v1190, 0.0
  %vm1269 = vcmp.gt.f32.partialorder %v1192, 0.0
  %vm1270 = vcmp.gt.f32.partialorder %v1194, 0.0
  %vm1271 = vcmp.gt.f32.partialorder %v1196, 0.0
  %vm1272 = vcmp.gt.f32.partialorder %v1200, 0.0
  %vm1273 = vcmp.gt.f32.partialorder %v1202, 0.0
  %vm1274 = vcmp.gt.f32.partialorder %v1204, 0.0
  %vm1275 = vcmp.gt.f32.partialorder %v1206, 0.0
  %vm1276 = vcmp.gt.f32.partialorder %v1210, 0.0
  %vm1277 = vcmp.gt.f32.partialorder %v1212, 0.0
  %vm1278 = vcmp.gt.f32.partialorder %v1214, 0.0
  %vm1279 = vcmp.gt.f32.partialorder %v1216, 0.0
  %vm1280 = vcmp.gt.f32.partialorder %v1220, 0.0
  %vm1281 = vcmp.gt.f32.partialorder %v1222, 0.0
  %vm1282 = vcmp.gt.f32.partialorder %v1224, 0.0
  %vm1283 = vcmp.gt.f32.partialorder %v1226, 0.0
  %vm1284 = vcmp.gt.f32.partialorder %v1230, 0.0
  %vm1285 = vcmp.gt.f32.partialorder %v1232, 0.0
  %vm1286 = vcmp.gt.f32.partialorder %v1234, 0.0
  %vm1287 = vcmp.gt.f32.partialorder %v1236, 0.0
  %vm1288 = vcmp.gt.f32.partialorder %v1240, 0.0
  %vm1289 = vcmp.gt.f32.partialorder %v1242, 0.0
  %vm1290 = vcmp.gt.f32.partialorder %v1244, 0.0
  %vm1291 = vcmp.gt.f32.partialorder %v1246, 0.0
  %vm1292 = vcmp.gt.f32.partialorder %v1250, 0.0
  %vm1293 = vcmp.gt.f32.partialorder %v1252, 0.0
  %vm1294 = vcmp.gt.f32.partialorder %v1254, 0.0
  %vm1295 = vcmp.gt.f32.partialorder %v1256, 0.0
  %vm1296 = vcmp.gt.f32.partialorder %v1260, 0.0
  %vm1297 = vcmp.gt.f32.partialorder %v1262, 0.0
  %vm1298 = vcmp.gt.f32.partialorder %v1264, 0.0
  %vm1299 = vcmp.gt.f32.partialorder %v1266, 0.0
  %v1300 = vmul.f32 %v1190, 0.2
  %v1301 = vmul.f32 %v1192, 0.2
  %v1302 = vmul.f32 %v1194, 0.2
  %v1303 = vmul.f32 %v1196, 0.2
  %v1304 = vmul.f32 %v1200, 0.2
  %v1305 = vmul.f32 %v1202, 0.2
  %v1306 = vmul.f32 %v1204, 0.2
  %v1307 = vmul.f32 %v1206, 0.2
  %v1308 = vmul.f32 %v1210, 0.2
  %v1309 = vmul.f32 %v1212, 0.2
  %v1310 = vmul.f32 %v1214, 0.2
  %v1311 = vmul.f32 %v1216, 0.2
  %v1312 = vmul.f32 %v1220, 0.2
  %v1313 = vmul.f32 %v1222, 0.2
  %v1314 = vmul.f32 %v1224, 0.2
  %v1315 = vmul.f32 %v1226, 0.2
  %v1316 = vmul.f32 %v1230, 0.2
  %v1317 = vmul.f32 %v1232, 0.2
  %v1318 = vmul.f32 %v1234, 0.2
  %v1319 = vmul.f32 %v1236, 0.2
  %v1320 = vmul.f32 %v1240, 0.2
  %v1321 = vmul.f32 %v1242, 0.2
  %v1322 = vmul.f32 %v1244, 0.2
  %v1323 = vmul.f32 %v1246, 0.2
  %v1324 = vmul.f32 %v1250, 0.2
  %v1325 = vmul.f32 %v1252, 0.2
  %v1326 = vmul.f32 %v1254, 0.2
  %v1327 = vmul.f32 %v1256, 0.2
  %v1328 = vmul.f32 %v1260, 0.2
  %v1329 = vmul.f32 %v1262, 0.2
  %v1330 = vmul.f32 %v1264, 0.2
  %v1331 = vmul.f32 %v1266, 0.2
  %v1332 = vsel %vm1268, %v1190, %v1300
  %v1333 = vsel %vm1269, %v1192, %v1301
  %v1334 = vsel %vm1270, %v1194, %v1302
  %v1335 = vsel %vm1271, %v1196, %v1303
  %v1336 = vsel %vm1272, %v1200, %v1304
  %v1337 = vsel %vm1273, %v1202, %v1305
  %v1338 = vsel %vm1274, %v1204, %v1306
  %v1339 = vsel %vm1275, %v1206, %v1307
  %v1340 = vsel %vm1276, %v1210, %v1308
  %v1341 = vsel %vm1277, %v1212, %v1309
  %v1342 = vsel %vm1278, %v1214, %v1310
  %v1343 = vsel %vm1279, %v1216, %v1311
  %v1344 = vsel %vm1280, %v1220, %v1312
  %v1345 = vsel %vm1281, %v1222, %v1313
  %v1346 = vsel %vm1282, %v1224, %v1314
  %v1347 = vsel %vm1283, %v1226, %v1315
  %v1348 = vsel %vm1284, %v1230, %v1316
  %v1349 = vsel %vm1285, %v1232, %v1317
  %v1350 = vsel %vm1286, %v1234, %v1318
  %v1351 = vsel %vm1287, %v1236, %v1319
  %v1352 = vsel %vm1288, %v1240, %v1320
  %v1353 = vsel %vm1289, %v1242, %v1321
  %v1354 = vsel %vm1290, %v1244, %v1322
  %v1355 = vsel %vm1291, %v1246, %v1323
  %v1356 = vsel %vm1292, %v1250, %v1324
  %v1357 = vsel %vm1293, %v1252, %v1325
  %v1358 = vsel %vm1294, %v1254, %v1326
  %v1359 = vsel %vm1295, %v1256, %v1327
  %v1360 = vsel %vm1296, %v1260, %v1328
  %v1361 = vsel %vm1297, %v1262, %v1329
  %v1362 = vsel %vm1298, %v1264, %v1330
  %v1363 = vsel %vm1299, %v1266, %v1331
  %v1364 = vld [vmem:[%s3] sm:$0x3]
  %v1366 = vlaneseq
  %v1367 = vshrl.u32 %v1366, 7
  %v1368 = vsub.s32 0, %v1367
  %v1369 = vrot.slane %v1364, %v1368
  %v1370 = vlaneseq
  %v1371 = vshrl.u32 %v1370, 7
  %v1372 = vsub.s32 1, %v1371
  %v1373 = vrot.slane %v1364, %v1372
  %v1376 = vmul.f32 %v1332, %v1369
  %v1377 = vmul.f32 %v1333, %v1373
  %v1378 = vmul.f32 %v1334, %v1369
  %v1379 = vmul.f32 %v1335, %v1373
  %v1380 = vmul.f32 %v1336, %v1369
  %v1381 = vmul.f32 %v1337, %v1373
  %v1382 = vmul.f32 %v1338, %v1369
  %v1383 = vmul.f32 %v1339, %v1373
  %v1384 = vmul.f32 %v1340, %v1369
  %v1385 = vmul.f32 %v1341, %v1373
  %v1386 = vmul.f32 %v1342, %v1369
  %v1387 = vmul.f32 %v1343, %v1373
  %v1388 = vmul.f32 %v1344, %v1369
  %v1389 = vmul.f32 %v1345, %v1373
  %v1390 = vmul.f32 %v1346, %v1369
  %v1391 = vmul.f32 %v1347, %v1373
  %v1392 = vmul.f32 %v1348, %v1369
  %v1393 = vmul.f32 %v1349, %v1373
  %v1394 = vmul.f32 %v1350, %v1369
  %v1395 = vmul.f32 %v1351, %v1373
  %v1396 = vmul.f32 %v1352, %v1369
  %v1397 = vmul.f32 %v1353, %v1373
  %v1398 = vmul.f32 %v1354, %v1369
  %v1399 = vmul.f32 %v1355, %v1373
  %v1400 = vmul.f32 %v1356, %v1369
  %v1401 = vmul.f32 %v1357, %v1373
  %v1402 = vmul.f32 %v1358, %v1369
  %v1403 = vmul.f32 %v1359, %v1373
  %v1404 = vmul.f32 %v1360, %v1369
  %v1405 = vmul.f32 %v1361, %v1373
  %v1406 = vmul.f32 %v1362, %v1369
  %v1407 = vmul.f32 %v1363, %v1373
  %v1408 = vadd.f32 %v1376, %v1377
  %1409 = vadd.xlane.f32.xlu0 %v1408
  %v1410 = vpop.xlane.xlu0 %1409
  %v1411 = vadd.f32 %v1378, %v1379
  %1412 = vadd.xlane.f32.xlu0 %v1411
  %v1413 = vpop.xlane.xlu0 %1412
  %v1414 = vadd.f32 %v1380, %v1381
  %1415 = vadd.xlane.f32.xlu0 %v1414
  %v1416 = vpop.xlane.xlu0 %1415
  %v1417 = vadd.f32 %v1382, %v1383
  %1418 = vadd.xlane.f32.xlu0 %v1417
  %v1419 = vpop.xlane.xlu0 %1418
  %v1420 = vadd.f32 %v1384, %v1385
  %1421 = vadd.xlane.f32.xlu0 %v1420
  %v1422 = vpop.xlane.xlu0 %1421
  %v1423 = vadd.f32 %v1386, %v1387
  %1424 = vadd.xlane.f32.xlu0 %v1423
  %v1425 = vpop.xlane.xlu0 %1424
  %v1426 = vadd.f32 %v1388, %v1389
  %1427 = vadd.xlane.f32.xlu0 %v1426
  %v1428 = vpop.xlane.xlu0 %1427
  %v1429 = vadd.f32 %v1390, %v1391
  %1430 = vadd.xlane.f32.xlu0 %v1429
  %v1431 = vpop.xlane.xlu0 %1430
  %v1432 = vadd.f32 %v1392, %v1393
  %1433 = vadd.xlane.f32.xlu0 %v1432
  %v1434 = vpop.xlane.xlu0 %1433
  %v1435 = vadd.f32 %v1394, %v1395
  %1436 = vadd.xlane.f32.xlu0 %v1435
  %v1437 = vpop.xlane.xlu0 %1436
  %v1438 = vadd.f32 %v1396, %v1397
  %1439 = vadd.xlane.f32.xlu0 %v1438
  %v1440 = vpop.xlane.xlu0 %1439
  %v1441 = vadd.f32 %v1398, %v1399
  %1442 = vadd.xlane.f32.xlu0 %v1441
  %v1443 = vpop.xlane.xlu0 %1442
  %v1444 = vadd.f32 %v1400, %v1401
  %1445 = vadd.xlane.f32.xlu0 %v1444
  %v1446 = vpop.xlane.xlu0 %1445
  %v1447 = vadd.f32 %v1402, %v1403
  %1448 = vadd.xlane.f32.xlu0 %v1447
  %v1449 = vpop.xlane.xlu0 %1448
  %v1450 = vadd.f32 %v1404, %v1405
  %1451 = vadd.xlane.f32.xlu0 %v1450
  %v1452 = vpop.xlane.xlu0 %1451
  %v1453 = vadd.f32 %v1406, %v1407
  %1454 = vadd.xlane.f32.xlu0 %v1453
  %v1455 = vpop.xlane.xlu0 %1454
  %v1456 = vld [vmem:[#allocation2] sm:$0x1]
  %v1458 = vlaneseq
  %v1459 = vshrl.u32 %v1458, 7
  %v1460 = vsub.s32 0, %v1459
  %v1461 = vrot.slane %v1456, %v1460
  %v1463 = vadd.f32 %v1410, %v1461
  %v1464 = vadd.f32 %v1413, %v1461
  %v1465 = vadd.f32 %v1416, %v1461
  %v1466 = vadd.f32 %v1419, %v1461
  %v1467 = vadd.f32 %v1422, %v1461
  %v1468 = vadd.f32 %v1425, %v1461
  %v1469 = vadd.f32 %v1428, %v1461
  %v1470 = vadd.f32 %v1431, %v1461
  %v1471 = vadd.f32 %v1434, %v1461
  %v1472 = vadd.f32 %v1437, %v1461
  %v1473 = vadd.f32 %v1440, %v1461
  %v1474 = vadd.f32 %v1443, %v1461
  %v1475 = vadd.f32 %v1446, %v1461
  %v1476 = vadd.f32 %v1449, %v1461
  %v1477 = vadd.f32 %v1452, %v1461
  %v1478 = vadd.f32 %v1455, %v1461
  %v1479 = vsub.f32 0.0, %v1463
  %v1480 = vsub.f32 0.0, %v1464
  %v1481 = vsub.f32 0.0, %v1465
  %v1482 = vsub.f32 0.0, %v1466
  %v1483 = vsub.f32 0.0, %v1467
  %v1484 = vsub.f32 0.0, %v1468
  %v1485 = vsub.f32 0.0, %v1469
  %v1486 = vsub.f32 0.0, %v1470
  %v1487 = vsub.f32 0.0, %v1471
  %v1488 = vsub.f32 0.0, %v1472
  %v1489 = vsub.f32 0.0, %v1473
  %v1490 = vsub.f32 0.0, %v1474
  %v1491 = vsub.f32 0.0, %v1475
  %v1492 = vsub.f32 0.0, %v1476
  %v1493 = vsub.f32 0.0, %v1477
  %v1494 = vsub.f32 0.0, %v1478
  %v1495 = vmul.f32 %v1479, 1.442695
  %v1496 = vpow.pop %v1495
  %v1497 = vmul.f32 %v1480, 1.442695
  %v1498 = vpow.pop %v1497
  %v1499 = vmul.f32 %v1481, 1.442695
  %v1500 = vpow.pop %v1499
  %v1501 = vmul.f32 %v1482, 1.442695
  %v1502 = vpow.pop %v1501
  %v1503 = vmul.f32 %v1483, 1.442695
  %v1504 = vpow.pop %v1503
  %v1505 = vmul.f32 %v1484, 1.442695
  %v1506 = vpow.pop %v1505
  %v1507 = vmul.f32 %v1485, 1.442695
  %v1508 = vpow.pop %v1507
  %v1509 = vmul.f32 %v1486, 1.442695
  %v1510 = vpow.pop %v1509
  %v1511 = vmul.f32 %v1487, 1.442695
  %v1512 = vpow.pop %v1511
  %v1513 = vmul.f32 %v1488, 1.442695
  %v1514 = vpow.pop %v1513
  %v1515 = vmul.f32 %v1489, 1.442695
  %v1516 = vpow.pop %v1515
  %v1517 = vmul.f32 %v1490, 1.442695
  %v1518 = vpow.pop %v1517
  %v1519 = vmul.f32 %v1491, 1.442695
  %v1520 = vpow.pop %v1519
  %v1521 = vmul.f32 %v1492, 1.442695
  %v1522 = vpow.pop %v1521
  %v1523 = vmul.f32 %v1493, 1.442695
  %v1524 = vpow.pop %v1523
  %v1525 = vmul.f32 %v1494, 1.442695
  %v1526 = vpow.pop %v1525
  %v1527 = vadd.f32 %v1496, 1.0
  %v1528 = vadd.f32 %v1498, 1.0
  %v1529 = vadd.f32 %v1500, 1.0
  %v1530 = vadd.f32 %v1502, 1.0
  %v1531 = vadd.f32 %v1504, 1.0
  %v1532 = vadd.f32 %v1506, 1.0
  %v1533 = vadd.f32 %v1508, 1.0
  %v1534 = vadd.f32 %v1510, 1.0
  %v1535 = vadd.f32 %v1512, 1.0
  %v1536 = vadd.f32 %v1514, 1.0
  %v1537 = vadd.f32 %v1516, 1.0
  %v1538 = vadd.f32 %v1518, 1.0
  %v1539 = vadd.f32 %v1520, 1.0
  %v1540 = vadd.f32 %v1522, 1.0
  %v1541 = vadd.f32 %v1524, 1.0
  %v1542 = vadd.f32 %v1526, 1.0
  %v1543 = vrcp.pop %v1527
  %v1544 = vmul.f32 1.0, %v1543
  %v1545 = vrcp.pop %v1528
  %v1546 = vmul.f32 1.0, %v1545
  %v1547 = vrcp.pop %v1529
  %v1548 = vmul.f32 1.0, %v1547
  %v1549 = vrcp.pop %v1530
  %v1550 = vmul.f32 1.0, %v1549
  %v1551 = vrcp.pop %v1531
  %v1552 = vmul.f32 1.0, %v1551
  %v1553 = vrcp.pop %v1532
  %v1554 = vmul.f32 1.0, %v1553
  %v1555 = vrcp.pop %v1533
  %v1556 = vmul.f32 1.0, %v1555
  %v1557 = vrcp.pop %v1534
  %v1558 = vmul.f32 1.0, %v1557
  %v1559 = vrcp.pop %v1535
  %v1560 = vmul.f32 1.0, %v1559
  %v1561 = vrcp.pop %v1536
  %v1562 = vmul.f32 1.0, %v1561
  %v1563 = vrcp.pop %v1537
  %v1564 = vmul.f32 1.0, %v1563
  %v1565 = vrcp.pop %v1538
  %v1566 = vmul.f32 1.0, %v1565
  %v1567 = vrcp.pop %v1539
  %v1568 = vmul.f32 1.0, %v1567
  %v1569 = vrcp.pop %v1540
  %v1570 = vmul.f32 1.0, %v1569
  %v1571 = vrcp.pop %v1541
  %v1572 = vmul.f32 1.0, %v1571
  %v1573 = vrcp.pop %v1542
  %v1574 = vmul.f32 1.0, %v1573
  %vm1575 = vcmask 7168
  %1576 = vst.msk [vmem:[%s5] sm:$0xff] %vm1575, %v1544
  %1577 = vst.msk [vmem:[%s5 + $0x8] sm:$0xff] %vm1575, %v1546
  %1578 = vst.msk [vmem:[%s5 + $0x10] sm:$0xff] %vm1575, %v1548
  %1579 = vst.msk [vmem:[%s5 + $0x18] sm:$0xff] %vm1575, %v1550
  %1580 = vst.msk [vmem:[%s5 + $0x20] sm:$0xff] %vm1575, %v1552
  %1581 = vst.msk [vmem:[%s5 + $0x28] sm:$0xff] %vm1575, %v1554
  %1582 = vst.msk [vmem:[%s5 + $0x30] sm:$0xff] %vm1575, %v1556
  %1583 = vst.msk [vmem:[%s5 + $0x38] sm:$0xff] %vm1575, %v1558
  %1584 = vst.msk [vmem:[%s5 + $0x40] sm:$0xff] %vm1575, %v1560
  %1585 = vst.msk [vmem:[%s5 + $0x48] sm:$0xff] %vm1575, %v1562
  %1586 = vst.msk [vmem:[%s5 + $0x50] sm:$0xff] %vm1575, %v1564
  %1587 = vst.msk [vmem:[%s5 + $0x58] sm:$0xff] %vm1575, %v1566
  %1588 = vst.msk [vmem:[%s5 + $0x60] sm:$0xff] %vm1575, %v1568
  %1589 = vst.msk [vmem:[%s5 + $0x68] sm:$0xff] %vm1575, %v1570
  %1590 = vst.msk [vmem:[%s5 + $0x70] sm:$0xff] %vm1575, %v1572
  %1591 = vst.msk [vmem:[%s5 + $0x78] sm:$0xff] %vm1575, %v1574
  // Predicated region
  $region22: #{_forward_impl.1} parent=0 // pred_check
    _
  $region23: #{_forward_impl.1} parent=0 // pred_check_branch
    %1593 = sbr.rel (0) target = $region25
  $region24: #{_forward_impl.1} parent=0 // pred_region
    _
  $region25: #{_forward_impl.1} parent=0 // pred_fallthru
    _
  // Predicated region
  $region26: #{_forward_impl.1} parent=0 // pred_check
    _
  $region27: #{_forward_impl.1} parent=0 // pred_check_branch
    %1595 = sbr.rel (0) target = $region29
  $region28: #{_forward_impl.1} parent=0 // pred_region
    _
  $region29: #{_forward_impl.1} parent=0 // pred_fallthru
    _

</llo_original>
